<compile_context>
chip_gen: v6e
topology: v6e:2x2x1
jax: 0.10.0
libtpu: 0.0.40
codegen_flags: <defaults>
</compile_context>

<pallas_src>
import functools
import math

import jax
import jax.numpy as jnp
from jax.experimental import pallas as pl
from jax.experimental.pallas import tpu as pltpu


def self_attention_kernel(q_ref, k_ref, v_ref, mask_ref, w_ref, b_ref,
                          o_ref, ctx_ref, *, batch, heads, head_dims):
    """Single invocation: all batch elements and all heads."""
    B = batch
    D = head_dims
    E = heads * D
    Sq = q_ref.shape[1]
    Sk = k_ref.shape[1]
    scale = jnp.float32(1.0 / math.sqrt(D))

    # ---- fused projections: one (B*Sq, E) @ (E, E) matmul each --------------
    qf = q_ref[...].reshape(B * Sq, E)
    kf = k_ref[...].reshape(B * Sk, E)
    vf = v_ref[...].reshape(B * Sk, E)

    b_all = b_ref[...]                      # (4, E): bq, bk, bv, bfc rows

    # 1/sqrt(D) folded into the projected q (smaller tile than the scores).
    qp = (jnp.dot(qf, w_ref[0], preferred_element_type=jnp.float32)
          + b_all[0:1, :]) * scale                                     # (B*Sq, E)
    kp = jnp.dot(kf, w_ref[1], preferred_element_type=jnp.float32) + b_all[1:2, :]
    vp = jnp.dot(vf, w_ref[2], preferred_element_type=jnp.float32) + b_all[2:3, :]

    qp3 = qp.reshape(B, Sq, E)
    kp3 = kp.reshape(B, Sk, E)
    vp3 = vp.reshape(B, Sk, E)

    # Mask handled once, shared by all heads (additive bias form).
    neg_bias = jnp.where(mask_ref[...] == 0,
                         jnp.float32(-1e20), jnp.float32(0.0))          # (B, Sq, Sk)

    # ---- per-head attention, batched over B; ctx written at lane offset -----
    for h in range(heads):                  # static, small unrolled loop
        lo = h * D
        qh = qp3[:, :, lo:lo + D]           # (B, Sq, D)
        kh = kp3[:, :, lo:lo + D]           # (B, Sk, D)
        vh = vp3[:, :, lo:lo + D]           # (B, Sk, D)

        s = jnp.einsum('bqd,bkd->bqk', qh, kh,
                       preferred_element_type=jnp.float32)              # (B, Sq, Sk)
        s = s + neg_bias
        s = s - jnp.max(s, axis=-1, keepdims=True)
        p = jnp.exp(s)
        attn = p * pl.reciprocal(jnp.sum(p, axis=-1, keepdims=True), approx=False)

        ctx_ref[:, :, lo:lo + D] = jnp.einsum('bqk,bkd->bqd', attn, vh,
                                              preferred_element_type=jnp.float32)

    # ---- one fused output projection (K = E) for all heads & batches --------
    ctx_flat = ctx_ref[...].reshape(B * Sq, E)
    out = jnp.dot(ctx_flat, w_ref[3], preferred_element_type=jnp.float32) + b_all[3:4, :]
    o_ref[...] = out.reshape(B, Sq, E).astype(o_ref.dtype)


def self_attention_pallas(query, key, value, mask, params, heads):
    """query/key/value: (B, S, E) f32, mask: (B, 1, Q, K) of {0,1}."""
    B, Sq, E = query.shape
    Sk = key.shape[1]
    D = E // heads
    wq, bq, wk, bk, wv, bv, wf, bf = params

    # Head-fused, pre-transposed weights built once in the wrapper (layout
    # plumbing, not compute): per-head Linear(D,D) == block-diagonal (E,E).
    # Packed into single inputs to cut DMA descriptor count (10 -> 6 inputs).
    eye_h = jnp.eye(heads, dtype=wq.dtype)
    w_packed = jnp.stack([jnp.kron(eye_h, wq.T),     # Wq  (E, E) block-diag, pre-T
                          jnp.kron(eye_h, wk.T),     # Wk
                          jnp.kron(eye_h, wv.T),     # Wv
                          wf.T])                     # Wfc (in, out)
    b_packed = jnp.stack([jnp.tile(bq, heads),
                          jnp.tile(bk, heads),
                          jnp.tile(bv, heads),
                          bf])                       # (4, E)
    mask3 = mask.reshape(B, Sq, Sk)                  # head-invariant mask

    kernel = functools.partial(self_attention_kernel,
                               batch=B, heads=heads, head_dims=D)

    out = pl.pallas_call(
        kernel,
        out_shape=jax.ShapeDtypeStruct((B, Sq, E), query.dtype),
        grid=(1,),                                   # single fused step
        in_specs=[
            pl.BlockSpec((B, Sq, E), lambda i: (0, 0, 0)),   # q (native layout)
            pl.BlockSpec((B, Sk, E), lambda i: (0, 0, 0)),   # k
            pl.BlockSpec((B, Sk, E), lambda i: (0, 0, 0)),   # v
            pl.BlockSpec((B, Sq, Sk), lambda i: (0, 0, 0)),  # mask
            pl.BlockSpec((4, E, E), lambda i: (0, 0, 0)),    # packed weights
            pl.BlockSpec((4, E), lambda i: (0, 0)),          # packed biases
        ],
        out_specs=pl.BlockSpec((B, Sq, E), lambda i: (0, 0, 0)),
        scratch_shapes=[pltpu.VMEM((B, Sq, E), jnp.float32)],  # per-head ctx slab
        compiler_params=pltpu.CompilerParams(
            dimension_semantics=("arbitrary",)),
    )(query, key, value, mask3, w_packed, b_packed)
    return out


def self_attention_ref(query, key, value, mask, params, heads):
    """Pure-JAX reference mirroring the PyTorch forward exactly."""
    B, Sq, E = query.shape
    D = E // heads
    wq, bq, wk, bk, wv, bv, wf, bf = params
    q = query.reshape(B, Sq, heads, D) @ wq.T + bq
    k = key.reshape(B, -1, heads, D) @ wk.T + bk
    v = value.reshape(B, -1, heads, D) @ wv.T + bv
    score = jnp.einsum('bqhd,bkhd->bhqk', q, k)
    score = jnp.where(mask == 0, jnp.float32(-1e20), score)
    attn = jax.nn.softmax(score / jnp.sqrt(jnp.float32(D)), axis=-1)
    out = jnp.einsum('bhqv,bvhd->bqhd', attn, v).reshape(B, Sq, E)
    return out @ wf.T + bf


if __name__ == "__main__":
    # small shapes consistent with the module
    B, S, heads, D = 2, 8, 4, 8
    E = heads * D  # input_dims = 32

    key0 = jax.random.PRNGKey(0)
    ks = jax.random.split(key0, 12)

    query = jax.random.normal(ks[0], (B, S, E), jnp.float32)
    key_ = jax.random.normal(ks[1], (B, S, E), jnp.float32)
    value = jax.random.normal(ks[2], (B, S, E), jnp.float32)

    # causal mask, shape (B, 1, Q, K), 1 = keep, 0 = mask
    mask = jnp.tril(jnp.ones((S, S), jnp.float32))[None, None].repeat(B, axis=0)

    # deterministic parameter init (nn.Linear shapes: weight (out, in), bias (out,))
    sc = 1.0 / math.sqrt(D)
    params = (
        jax.random.uniform(ks[3], (D, D), jnp.float32, -sc, sc),   # Wq
        jax.random.uniform(ks[4], (D,), jnp.float32, -sc, sc),     # bq
        jax.random.uniform(ks[5], (D, D), jnp.float32, -sc, sc),   # Wk
        jax.random.uniform(ks[6], (D,), jnp.float32, -sc, sc),     # bk
        jax.random.uniform(ks[7], (D, D), jnp.float32, -sc, sc),   # Wv
        jax.random.uniform(ks[8], (D,), jnp.float32, -sc, sc),     # bv
        jax.random.uniform(ks[9], (E, E), jnp.float32, -1.0 / math.sqrt(E), 1.0 / math.sqrt(E)),  # Wfc
        jax.random.uniform(ks[10], (E,), jnp.float32, -1.0 / math.sqrt(E), 1.0 / math.sqrt(E)),   # bfc
    )

    out = self_attention_pallas(query, key_, value, mask, params, heads)
    out = jax.block_until_ready(out)

    ref = self_attention_ref(query, key_, value, mask, params, heads)
    assert out.shape == (B, S, E)
    assert jnp.allclose(out, ref, rtol=1e-4, atol=1e-4), "Pallas output mismatch vs reference"

    print("KERNEL_OK")
</pallas_src>

<mosaic_0001>
module attributes {stable_mosaic.version = 11 : i64} {
  func.func @self_attention_kernel(%arg0: i32, %arg1: memref<2x8x32xf32, #tpu.memory_space<vmem>>, %arg2: memref<2x8x32xf32, #tpu.memory_space<vmem>>, %arg3: memref<2x8x32xf32, #tpu.memory_space<vmem>>, %arg4: memref<2x8x8xf32, #tpu.memory_space<vmem>>, %arg5: memref<4x32x32xf32, #tpu.memory_space<vmem>>, %arg6: memref<4x32xf32, #tpu.memory_space<vmem>>, %arg7: memref<2x8x32xf32, #tpu.memory_space<vmem>>, %arg8: memref<2x8x32xf32, #tpu.memory_space<vmem>>) attributes {dimension_semantics = [#tpu.dimension_semantics<arbitrary>], iteration_bounds = array<i64: 1>, scalar_prefetch = 0 : i64, scratch_operands = 1 : i64, tpu.core_type = #tpu.core_type<tc>, window_params = [{pipeline_mode = #tpu.pipeline_mode<synchronous>, transform_indices = @transform_0, window_bounds = array<i64: 2, 8, 32>}, {pipeline_mode = #tpu.pipeline_mode<synchronous>, transform_indices = @transform_1, window_bounds = array<i64: 2, 8, 32>}, {pipeline_mode = #tpu.pipeline_mode<synchronous>, transform_indices = @transform_2, window_bounds = array<i64: 2, 8, 32>}, {pipeline_mode = #tpu.pipeline_mode<synchronous>, transform_indices = @transform_3, window_bounds = array<i64: 2, 8, 8>}, {pipeline_mode = #tpu.pipeline_mode<synchronous>, transform_indices = @transform_4, window_bounds = array<i64: 4, 32, 32>}, {pipeline_mode = #tpu.pipeline_mode<synchronous>, transform_indices = @transform_5, window_bounds = array<i64: 4, 32>}, {pipeline_mode = #tpu.pipeline_mode<synchronous>, transform_indices = @transform_6, window_bounds = array<i64: 2, 8, 32>}]} {
    %c0 = arith.constant 0 : index
    %c0_0 = arith.constant 0 : index
    %c0_1 = arith.constant 0 : index
    %0 = vector.load %arg1[%c0, %c0_0, %c0_1] : memref<2x8x32xf32, #tpu.memory_space<vmem>>, vector<2x8x32xf32>
    %1 = vector.shape_cast %0 : vector<2x8x32xf32> to vector<16x32xf32>
    %c0_2 = arith.constant 0 : index
    %c0_3 = arith.constant 0 : index
    %c0_4 = arith.constant 0 : index
    %2 = vector.load %arg2[%c0_2, %c0_3, %c0_4] : memref<2x8x32xf32, #tpu.memory_space<vmem>>, vector<2x8x32xf32>
    %3 = vector.shape_cast %2 : vector<2x8x32xf32> to vector<16x32xf32>
    %c0_5 = arith.constant 0 : index
    %c0_6 = arith.constant 0 : index
    %c0_7 = arith.constant 0 : index
    %4 = vector.load %arg3[%c0_5, %c0_6, %c0_7] : memref<2x8x32xf32, #tpu.memory_space<vmem>>, vector<2x8x32xf32>
    %5 = vector.shape_cast %4 : vector<2x8x32xf32> to vector<16x32xf32>
    %c0_8 = arith.constant 0 : index
    %c0_9 = arith.constant 0 : index
    %6 = vector.load %arg6[%c0_8, %c0_9] : memref<4x32xf32, #tpu.memory_space<vmem>>, vector<4x32xf32>
    %c0_10 = arith.constant 0 : index
    %c0_11 = arith.constant 0 : index
    %c0_12 = arith.constant 0 : index
    %7 = vector.load %arg5[%c0_10, %c0_11, %c0_12] : memref<4x32x32xf32, #tpu.memory_space<vmem>>, vector<1x32x32xf32>
    %8 = vector.shape_cast %7 : vector<1x32x32xf32> to vector<32x32xf32>
    %cst = arith.constant dense<0.000000e+00> : vector<16x32xf32>
    %9 = tpu.matmul %1, %8, %cst {dimension_numbers = #tpu.dot_dimension_numbers<[1], [0], [0], [1], [0, 0, 1, 1], [], []>} : vector<16x32xf32>, vector<32x32xf32>, vector<16x32xf32> -> vector<16x32xf32>
    %10 = vector.extract_strided_slice %6 {offsets = [0, 0], sizes = [1, 32], strides = [1, 1]} : vector<4x32xf32> to vector<1x32xf32>
    %11 = vector.broadcast %10 : vector<1x32xf32> to vector<16x32xf32>
    %12 = arith.addf %9, %11 : vector<16x32xf32>
    %cst_13 = arith.constant 0.353553385 : f32
    %13 = vector.broadcast %cst_13 : f32 to vector<16x32xf32>
    %14 = arith.mulf %12, %13 : vector<16x32xf32>
    %c1 = arith.constant 1 : index
    %c0_14 = arith.constant 0 : index
    %c0_15 = arith.constant 0 : index
    %15 = vector.load %arg5[%c1, %c0_14, %c0_15] : memref<4x32x32xf32, #tpu.memory_space<vmem>>, vector<1x32x32xf32>
    %16 = vector.shape_cast %15 : vector<1x32x32xf32> to vector<32x32xf32>
    %cst_16 = arith.constant dense<0.000000e+00> : vector<16x32xf32>
    %17 = tpu.matmul %3, %16, %cst_16 {dimension_numbers = #tpu.dot_dimension_numbers<[1], [0], [0], [1], [0, 0, 1, 1], [], []>} : vector<16x32xf32>, vector<32x32xf32>, vector<16x32xf32> -> vector<16x32xf32>
    %18 = vector.extract_strided_slice %6 {offsets = [1, 0], sizes = [1, 32], strides = [1, 1]} : vector<4x32xf32> to vector<1x32xf32>
    %19 = vector.broadcast %18 : vector<1x32xf32> to vector<16x32xf32>
    %20 = arith.addf %17, %19 : vector<16x32xf32>
    %c2 = arith.constant 2 : index
    %c0_17 = arith.constant 0 : index
    %c0_18 = arith.constant 0 : index
    %21 = vector.load %arg5[%c2, %c0_17, %c0_18] : memref<4x32x32xf32, #tpu.memory_space<vmem>>, vector<1x32x32xf32>
    %22 = vector.shape_cast %21 : vector<1x32x32xf32> to vector<32x32xf32>
    %cst_19 = arith.constant dense<0.000000e+00> : vector<16x32xf32>
    %23 = tpu.matmul %5, %22, %cst_19 {dimension_numbers = #tpu.dot_dimension_numbers<[1], [0], [0], [1], [0, 0, 1, 1], [], []>} : vector<16x32xf32>, vector<32x32xf32>, vector<16x32xf32> -> vector<16x32xf32>
    %24 = vector.extract_strided_slice %6 {offsets = [2, 0], sizes = [1, 32], strides = [1, 1]} : vector<4x32xf32> to vector<1x32xf32>
    %25 = vector.broadcast %24 : vector<1x32xf32> to vector<16x32xf32>
    %26 = arith.addf %23, %25 : vector<16x32xf32>
    %27 = vector.shape_cast %14 : vector<16x32xf32> to vector<2x8x32xf32>
    %28 = vector.shape_cast %20 : vector<16x32xf32> to vector<2x8x32xf32>
    %29 = vector.shape_cast %26 : vector<16x32xf32> to vector<2x8x32xf32>
    %c0_20 = arith.constant 0 : index
    %c0_21 = arith.constant 0 : index
    %c0_22 = arith.constant 0 : index
    %30 = vector.load %arg4[%c0_20, %c0_21, %c0_22] : memref<2x8x8xf32, #tpu.memory_space<vmem>>, vector<2x8x8xf32>
    %cst_23 = arith.constant 0.000000e+00 : f32
    %31 = vector.broadcast %cst_23 : f32 to vector<2x8x8xf32>
    %32 = arith.cmpf oeq, %30, %31 : vector<2x8x8xf32>
    %cst_24 = arith.constant -1.000000e+20 : f32
    %cst_25 = arith.constant 0.000000e+00 : f32
    %33 = vector.broadcast %cst_24 : f32 to vector<2x8x8xf32>
    %34 = vector.broadcast %cst_25 : f32 to vector<2x8x8xf32>
    %35 = arith.select %32, %33, %34 : vector<2x8x8xi1>, vector<2x8x8xf32>
    %36 = vector.extract_strided_slice %27 {offsets = [0, 0, 0], sizes = [2, 8, 8], strides = [1, 1, 1]} : vector<2x8x32xf32> to vector<2x8x8xf32>
    %37 = vector.extract_strided_slice %28 {offsets = [0, 0, 0], sizes = [2, 8, 8], strides = [1, 1, 1]} : vector<2x8x32xf32> to vector<2x8x8xf32>
    %38 = vector.extract_strided_slice %29 {offsets = [0, 0, 0], sizes = [2, 8, 8], strides = [1, 1, 1]} : vector<2x8x32xf32> to vector<2x8x8xf32>
    "tpu.trace_start"() <{level = 10 : i32, message = "bqd,bkd->bqk"}> : () -> ()
    %cst_26 = arith.constant dense<0.000000e+00> : vector<2x8x8xf32>
    %39 = tpu.matmul %36, %37, %cst_26 {dimension_numbers = #tpu.dot_dimension_numbers<[2], [2], [1], [1], [0, 0, 0, 1, 1, 1], [0], [0]>} : vector<2x8x8xf32>, vector<2x8x8xf32>, vector<2x8x8xf32> -> vector<2x8x8xf32>
    "tpu.trace_stop"() : () -> ()
    %40 = arith.addf %39, %35 : vector<2x8x8xf32>
    %cst_27 = arith.constant dense<0xFF800000> : vector<2x8xf32>
    %41 = vector.multi_reduction <maximumf>, %40, %cst_27 [2] : vector<2x8x8xf32> to vector<2x8xf32>
    %42 = vector.shape_cast %41 : vector<2x8xf32> to vector<2x8x1xf32>
    %43 = vector.broadcast %42 : vector<2x8x1xf32> to vector<2x8x8xf32>
    %44 = arith.subf %40, %43 : vector<2x8x8xf32>
    %45 = math.exp %44 : vector<2x8x8xf32>
    %cst_28 = arith.constant dense<0.000000e+00> : vector<2x8xf32>
    %46 = vector.multi_reduction <add>, %45, %cst_28 [2] : vector<2x8x8xf32> to vector<2x8xf32>
    %47 = vector.shape_cast %46 : vector<2x8xf32> to vector<2x8x1xf32>
    %48 = tpu.reciprocal %47 : vector<2x8x1xf32> -> vector<2x8x1xf32>
    %49 = vector.broadcast %48 : vector<2x8x1xf32> to vector<2x8x8xf32>
    %50 = arith.mulf %45, %49 : vector<2x8x8xf32>
    "tpu.trace_start"() <{level = 10 : i32, message = "bqk,bkd->bqd"}> : () -> ()
    %cst_29 = arith.constant dense<0.000000e+00> : vector<2x8x8xf32>
    %51 = tpu.matmul %50, %38, %cst_29 {dimension_numbers = #tpu.dot_dimension_numbers<[2], [1], [1], [2], [0, 0, 0, 1, 1, 2], [0], [0]>} : vector<2x8x8xf32>, vector<2x8x8xf32>, vector<2x8x8xf32> -> vector<2x8x8xf32>
    "tpu.trace_stop"() : () -> ()
    %c0_30 = arith.constant 0 : index
    %c0_31 = arith.constant 0 : index
    %c0_32 = arith.constant 0 : index
    %52 = vector.load %arg8[%c0_30, %c0_31, %c0_32] : memref<2x8x32xf32, #tpu.memory_space<vmem>>, vector<2x8x8xf32>
    tpu.vector_store %arg8[%c0_30, %c0_31, %c0_32], %51 {strides = array<i32>} : memref<2x8x32xf32, #tpu.memory_space<vmem>>, vector<2x8x8xf32>,
    %53 = vector.extract_strided_slice %27 {offsets = [0, 0, 8], sizes = [2, 8, 8], strides = [1, 1, 1]} : vector<2x8x32xf32> to vector<2x8x8xf32>
    %54 = vector.extract_strided_slice %28 {offsets = [0, 0, 8], sizes = [2, 8, 8], strides = [1, 1, 1]} : vector<2x8x32xf32> to vector<2x8x8xf32>
    %55 = vector.extract_strided_slice %29 {offsets = [0, 0, 8], sizes = [2, 8, 8], strides = [1, 1, 1]} : vector<2x8x32xf32> to vector<2x8x8xf32>
    "tpu.trace_start"() <{level = 10 : i32, message = "bqd,bkd->bqk"}> : () -> ()
    %cst_33 = arith.constant dense<0.000000e+00> : vector<2x8x8xf32>
    %56 = tpu.matmul %53, %54, %cst_33 {dimension_numbers = #tpu.dot_dimension_numbers<[2], [2], [1], [1], [0, 0, 0, 1, 1, 1], [0], [0]>} : vector<2x8x8xf32>, vector<2x8x8xf32>, vector<2x8x8xf32> -> vector<2x8x8xf32>
    "tpu.trace_stop"() : () -> ()
    %57 = arith.addf %56, %35 : vector<2x8x8xf32>
    %cst_34 = arith.constant dense<0xFF800000> : vector<2x8xf32>
    %58 = vector.multi_reduction <maximumf>, %57, %cst_34 [2] : vector<2x8x8xf32> to vector<2x8xf32>
    %59 = vector.shape_cast %58 : vector<2x8xf32> to vector<2x8x1xf32>
    %60 = vector.broadcast %59 : vector<2x8x1xf32> to vector<2x8x8xf32>
    %61 = arith.subf %57, %60 : vector<2x8x8xf32>
    %62 = math.exp %61 : vector<2x8x8xf32>
    %cst_35 = arith.constant dense<0.000000e+00> : vector<2x8xf32>
    %63 = vector.multi_reduction <add>, %62, %cst_35 [2] : vector<2x8x8xf32> to vector<2x8xf32>
    %64 = vector.shape_cast %63 : vector<2x8xf32> to vector<2x8x1xf32>
    %65 = tpu.reciprocal %64 : vector<2x8x1xf32> -> vector<2x8x1xf32>
    %66 = vector.broadcast %65 : vector<2x8x1xf32> to vector<2x8x8xf32>
    %67 = arith.mulf %62, %66 : vector<2x8x8xf32>
    "tpu.trace_start"() <{level = 10 : i32, message = "bqk,bkd->bqd"}> : () -> ()
    %cst_36 = arith.constant dense<0.000000e+00> : vector<2x8x8xf32>
    %68 = tpu.matmul %67, %55, %cst_36 {dimension_numbers = #tpu.dot_dimension_numbers<[2], [1], [1], [2], [0, 0, 0, 1, 1, 2], [0], [0]>} : vector<2x8x8xf32>, vector<2x8x8xf32>, vector<2x8x8xf32> -> vector<2x8x8xf32>
    "tpu.trace_stop"() : () -> ()
    %c0_37 = arith.constant 0 : index
    %c0_38 = arith.constant 0 : index
    %c8 = arith.constant 8 : index
    %69 = vector.load %arg8[%c0_37, %c0_38, %c8] : memref<2x8x32xf32, #tpu.memory_space<vmem>>, vector<2x8x8xf32>
    tpu.vector_store %arg8[%c0_37, %c0_38, %c8], %68 {strides = array<i32>} : memref<2x8x32xf32, #tpu.memory_space<vmem>>, vector<2x8x8xf32>,
    %70 = vector.extract_strided_slice %27 {offsets = [0, 0, 16], sizes = [2, 8, 8], strides = [1, 1, 1]} : vector<2x8x32xf32> to vector<2x8x8xf32>
    %71 = vector.extract_strided_slice %28 {offsets = [0, 0, 16], sizes = [2, 8, 8], strides = [1, 1, 1]} : vector<2x8x32xf32> to vector<2x8x8xf32>
    %72 = vector.extract_strided_slice %29 {offsets = [0, 0, 16], sizes = [2, 8, 8], strides = [1, 1, 1]} : vector<2x8x32xf32> to vector<2x8x8xf32>
    "tpu.trace_start"() <{level = 10 : i32, message = "bqd,bkd->bqk"}> : () -> ()
    %cst_39 = arith.constant dense<0.000000e+00> : vector<2x8x8xf32>
    %73 = tpu.matmul %70, %71, %cst_39 {dimension_numbers = #tpu.dot_dimension_numbers<[2], [2], [1], [1], [0, 0, 0, 1, 1, 1], [0], [0]>} : vector<2x8x8xf32>, vector<2x8x8xf32>, vector<2x8x8xf32> -> vector<2x8x8xf32>
    "tpu.trace_stop"() : () -> ()
    %74 = arith.addf %73, %35 : vector<2x8x8xf32>
    %cst_40 = arith.constant dense<0xFF800000> : vector<2x8xf32>
    %75 = vector.multi_reduction <maximumf>, %74, %cst_40 [2] : vector<2x8x8xf32> to vector<2x8xf32>
    %76 = vector.shape_cast %75 : vector<2x8xf32> to vector<2x8x1xf32>
    %77 = vector.broadcast %76 : vector<2x8x1xf32> to vector<2x8x8xf32>
    %78 = arith.subf %74, %77 : vector<2x8x8xf32>
    %79 = math.exp %78 : vector<2x8x8xf32>
    %cst_41 = arith.constant dense<0.000000e+00> : vector<2x8xf32>
    %80 = vector.multi_reduction <add>, %79, %cst_41 [2] : vector<2x8x8xf32> to vector<2x8xf32>
    %81 = vector.shape_cast %80 : vector<2x8xf32> to vector<2x8x1xf32>
    %82 = tpu.reciprocal %81 : vector<2x8x1xf32> -> vector<2x8x1xf32>
    %83 = vector.broadcast %82 : vector<2x8x1xf32> to vector<2x8x8xf32>
    %84 = arith.mulf %79, %83 : vector<2x8x8xf32>
    "tpu.trace_start"() <{level = 10 : i32, message = "bqk,bkd->bqd"}> : () -> ()
    %cst_42 = arith.constant dense<0.000000e+00> : vector<2x8x8xf32>
    %85 = tpu.matmul %84, %72, %cst_42 {dimension_numbers = #tpu.dot_dimension_numbers<[2], [1], [1], [2], [0, 0, 0, 1, 1, 2], [0], [0]>} : vector<2x8x8xf32>, vector<2x8x8xf32>, vector<2x8x8xf32> -> vector<2x8x8xf32>
    "tpu.trace_stop"() : () -> ()
    %c0_43 = arith.constant 0 : index
    %c0_44 = arith.constant 0 : index
    %c16 = arith.constant 16 : index
    %86 = vector.load %arg8[%c0_43, %c0_44, %c16] : memref<2x8x32xf32, #tpu.memory_space<vmem>>, vector<2x8x8xf32>
    tpu.vector_store %arg8[%c0_43, %c0_44, %c16], %85 {strides = array<i32>} : memref<2x8x32xf32, #tpu.memory_space<vmem>>, vector<2x8x8xf32>,
    %87 = vector.extract_strided_slice %27 {offsets = [0, 0, 24], sizes = [2, 8, 8], strides = [1, 1, 1]} : vector<2x8x32xf32> to vector<2x8x8xf32>
    %88 = vector.extract_strided_slice %28 {offsets = [0, 0, 24], sizes = [2, 8, 8], strides = [1, 1, 1]} : vector<2x8x32xf32> to vector<2x8x8xf32>
    %89 = vector.extract_strided_slice %29 {offsets = [0, 0, 24], sizes = [2, 8, 8], strides = [1, 1, 1]} : vector<2x8x32xf32> to vector<2x8x8xf32>
    "tpu.trace_start"() <{level = 10 : i32, message = "bqd,bkd->bqk"}> : () -> ()
    %cst_45 = arith.constant dense<0.000000e+00> : vector<2x8x8xf32>
    %90 = tpu.matmul %87, %88, %cst_45 {dimension_numbers = #tpu.dot_dimension_numbers<[2], [2], [1], [1], [0, 0, 0, 1, 1, 1], [0], [0]>} : vector<2x8x8xf32>, vector<2x8x8xf32>, vector<2x8x8xf32> -> vector<2x8x8xf32>
    "tpu.trace_stop"() : () -> ()
    %91 = arith.addf %90, %35 : vector<2x8x8xf32>
    %cst_46 = arith.constant dense<0xFF800000> : vector<2x8xf32>
    %92 = vector.multi_reduction <maximumf>, %91, %cst_46 [2] : vector<2x8x8xf32> to vector<2x8xf32>
    %93 = vector.shape_cast %92 : vector<2x8xf32> to vector<2x8x1xf32>
    %94 = vector.broadcast %93 : vector<2x8x1xf32> to vector<2x8x8xf32>
    %95 = arith.subf %91, %94 : vector<2x8x8xf32>
    %96 = math.exp %95 : vector<2x8x8xf32>
    %cst_47 = arith.constant dense<0.000000e+00> : vector<2x8xf32>
    %97 = vector.multi_reduction <add>, %96, %cst_47 [2] : vector<2x8x8xf32> to vector<2x8xf32>
    %98 = vector.shape_cast %97 : vector<2x8xf32> to vector<2x8x1xf32>
    %99 = tpu.reciprocal %98 : vector<2x8x1xf32> -> vector<2x8x1xf32>
    %100 = vector.broadcast %99 : vector<2x8x1xf32> to vector<2x8x8xf32>
    %101 = arith.mulf %96, %100 : vector<2x8x8xf32>
    "tpu.trace_start"() <{level = 10 : i32, message = "bqk,bkd->bqd"}> : () -> ()
    %cst_48 = arith.constant dense<0.000000e+00> : vector<2x8x8xf32>
    %102 = tpu.matmul %101, %89, %cst_48 {dimension_numbers = #tpu.dot_dimension_numbers<[2], [1], [1], [2], [0, 0, 0, 1, 1, 2], [0], [0]>} : vector<2x8x8xf32>, vector<2x8x8xf32>, vector<2x8x8xf32> -> vector<2x8x8xf32>
    "tpu.trace_stop"() : () -> ()
    %c0_49 = arith.constant 0 : index
    %c0_50 = arith.constant 0 : index
    %c24 = arith.constant 24 : index
    %103 = vector.load %arg8[%c0_49, %c0_50, %c24] : memref<2x8x32xf32, #tpu.memory_space<vmem>>, vector<2x8x8xf32>
    tpu.vector_store %arg8[%c0_49, %c0_50, %c24], %102 {strides = array<i32>} : memref<2x8x32xf32, #tpu.memory_space<vmem>>, vector<2x8x8xf32>,
    %c0_51 = arith.constant 0 : index
    %c0_52 = arith.constant 0 : index
    %c0_53 = arith.constant 0 : index
    %104 = vector.load %arg8[%c0_51, %c0_52, %c0_53] : memref<2x8x32xf32, #tpu.memory_space<vmem>>, vector<2x8x32xf32>
    %105 = vector.shape_cast %104 : vector<2x8x32xf32> to vector<16x32xf32>
    %c3 = arith.constant 3 : index
    %c0_54 = arith.constant 0 : index
    %c0_55 = arith.constant 0 : index
    %106 = vector.load %arg5[%c3, %c0_54, %c0_55] : memref<4x32x32xf32, #tpu.memory_space<vmem>>, vector<1x32x32xf32>
    %107 = vector.shape_cast %106 : vector<1x32x32xf32> to vector<32x32xf32>
    %cst_56 = arith.constant dense<0.000000e+00> : vector<16x32xf32>
    %108 = tpu.matmul %105, %107, %cst_56 {dimension_numbers = #tpu.dot_dimension_numbers<[1], [0], [0], [1], [0, 0, 1, 1], [], []>} : vector<16x32xf32>, vector<32x32xf32>, vector<16x32xf32> -> vector<16x32xf32>
    %109 = vector.extract_strided_slice %6 {offsets = [3, 0], sizes = [1, 32], strides = [1, 1]} : vector<4x32xf32> to vector<1x32xf32>
    %110 = vector.broadcast %109 : vector<1x32xf32> to vector<16x32xf32>
    %111 = arith.addf %108, %110 : vector<16x32xf32>
    %112 = vector.shape_cast %111 : vector<16x32xf32> to vector<2x8x32xf32>
    %c0_57 = arith.constant 0 : index
    %c0_58 = arith.constant 0 : index
    %c0_59 = arith.constant 0 : index
    %113 = vector.load %arg7[%c0_57, %c0_58, %c0_59] : memref<2x8x32xf32, #tpu.memory_space<vmem>>, vector<2x8x32xf32>
    tpu.vector_store %arg7[%c0_57, %c0_58, %c0_59], %112 {strides = array<i32>} : memref<2x8x32xf32, #tpu.memory_space<vmem>>, vector<2x8x32xf32>,
    return
  }
  func.func @transform_0(%arg0: i32) -> (i32, i32, i32) {
    %c0_i32 = arith.constant 0 : i32
    %c0_i32_0 = arith.constant 0 : i32
    %c0_i32_1 = arith.constant 0 : i32
    %c0_i32_2 = arith.constant 0 : i32
    return %c0_i32, %c0_i32_0, %c0_i32_1 : i32, i32, i32
  }
  func.func @transform_1(%arg0: i32) -> (i32, i32, i32) {
    %c0_i32 = arith.constant 0 : i32
    %c0_i32_0 = arith.constant 0 : i32
    %c0_i32_1 = arith.constant 0 : i32
    %c0_i32_2 = arith.constant 0 : i32
    return %c0_i32, %c0_i32_0, %c0_i32_1 : i32, i32, i32
  }
  func.func @transform_2(%arg0: i32) -> (i32, i32, i32) {
    %c0_i32 = arith.constant 0 : i32
    %c0_i32_0 = arith.constant 0 : i32
    %c0_i32_1 = arith.constant 0 : i32
    %c0_i32_2 = arith.constant 0 : i32
    return %c0_i32, %c0_i32_0, %c0_i32_1 : i32, i32, i32
  }
  func.func @transform_3(%arg0: i32) -> (i32, i32, i32) {
    %c0_i32 = arith.constant 0 : i32
    %c0_i32_0 = arith.constant 0 : i32
    %c0_i32_1 = arith.constant 0 : i32
    %c0_i32_2 = arith.constant 0 : i32
    return %c0_i32, %c0_i32_0, %c0_i32_1 : i32, i32, i32
  }
  func.func @transform_4(%arg0: i32) -> (i32, i32, i32) {
    %c0_i32 = arith.constant 0 : i32
    %c0_i32_0 = arith.constant 0 : i32
    %c0_i32_1 = arith.constant 0 : i32
    %c0_i32_2 = arith.constant 0 : i32
    return %c0_i32, %c0_i32_0, %c0_i32_1 : i32, i32, i32
  }
  func.func @transform_5(%arg0: i32) -> (i32, i32) {
    %c0_i32 = arith.constant 0 : i32
    %c0_i32_0 = arith.constant 0 : i32
    %c0_i32_1 = arith.constant 0 : i32
    return %c0_i32, %c0_i32_0 : i32, i32
  }
  func.func @transform_6(%arg0: i32) -> (i32, i32, i32) {
    %c0_i32 = arith.constant 0 : i32
    %c0_i32_0 = arith.constant 0 : i32
    %c0_i32_1 = arith.constant 0 : i32
    %c0_i32_2 = arith.constant 0 : i32
    return %c0_i32, %c0_i32_0, %c0_i32_1 : i32, i32, i32
  }
}

</mosaic_0001>

<llo_original>
// kernel: tpu_custom_call.1
$region0: #{tpu_custom_call.1}
  #allocation0 [shape = 'u32[]', space=smem, size = 0x4, offset = 0x4, fixed_abs, tag = 'smem constant byte address 0x4 - core index']
  #allocation1 [shape = 'u32[144,128]{1,0:T(1,128)}', space=vmem, size = 0x12000, scoped, tag = 'internal scratch']
  #allocation2 [shape = 'f32[2,8,32]{2,1,0:T(8,128)}', space=vmem, size = 0x2000, scoped, tag = 'scratch operand']
  %s0 = inlined_call_operand.hbm [shape: f32[2,8,32], index: 0, kind: input, shape index: {}]
  %s1 = inlined_call_operand.hbm [shape: f32[2,8,32], index: 1, kind: input, shape index: {}]
  %s2 = inlined_call_operand.hbm [shape: f32[2,8,32], index: 2, kind: input, shape index: {}]
  %s3 = inlined_call_operand.hbm [shape: f32[2,8,8], index: 3, kind: input, shape index: {}]
  %s4 = inlined_call_operand.hbm [shape: f32[4,32,32], index: 4, kind: input, shape index: {}]
  %s5 = inlined_call_operand.vmem [shape: f32[4,32], index: 5, kind: input, shape index: {}]
  %s6 = inlined_call_operand.hbm [shape: f32[2,8,32], index: 6, kind: output, shape index: {}]
  %s7 = sld [smem:[#allocation0]]
  $region54: #{tpu_custom_call.1} parent=0
    _
  %s9 = ssub.s32 1, %s7
  %s10 = scalar_select 0, %s9, %s7
  $region1: #{tpu_custom_call.1} parent=0
    #allocation3 [shape = 'u8[8192]{0}', space=vmem, size = 0x2000, scoped, tag = 'input window, operand 0, single buffered']
    #allocation4 [shape = 's32[1]{0}', space=sflag, size = 0x4, scoped, tag = 'scoped memory for tpu_custom_call.1']
    #allocation5 [shape = 's32[1]{0}', space=sflag, size = 0x4, scoped, tag = 'scoped memory for tpu_custom_call.1']
    #allocation6 [shape = 'u8[8192]{0}', space=vmem, size = 0x2000, scoped, tag = 'input window, operand 1, single buffered']
    #allocation7 [shape = 's32[1]{0}', space=sflag, size = 0x4, scoped, tag = 'scoped memory for tpu_custom_call.1']
    #allocation8 [shape = 'u8[8192]{0}', space=vmem, size = 0x2000, scoped, tag = 'input window, operand 2, single buffered']
    #allocation9 [shape = 'u8[8192]{0}', space=vmem, size = 0x2000, scoped, tag = 'input window, operand 3, single buffered']
    #allocation10 [shape = 's32[1]{0}', space=sflag, size = 0x4, scoped, tag = 'scoped memory for tpu_custom_call.1']
    #allocation11 [shape = 'u8[65536]{0}', space=vmem, size = 0x10000, scoped, tag = 'input window, operand 4, single buffered']
    #allocation12 [shape = 'u8[8192]{0}', space=vmem, size = 0x2000, scoped, tag = 'output window, operand 0, single buffered']
    %11 = vsyncpa [#allocation4], 0
    %12 = vsyncpa [#allocation7], 0
    %13 = vsyncpa [#allocation10], 0
    %14 = vsyncpa [#allocation5], 0
    // Predicated region
    $region2: #{tpu_custom_call.1} parent=1 // pred_check
      _
    $region3: #{tpu_custom_call.1} parent=1 // pred_check_branch
      %16 = sbr.rel (0) target = $region5
    $region4: #{tpu_custom_call.1} parent=1 // pred_region
      %s18 = ssub.s32 256, 256
      %19 = vsyncadd [#allocation4], %s18
      %s20 = sshll.u32 [#allocation3], 4
      %s21 = int_to_ptr.vmem [resolvable:$true] %s20
      %26 = dma.hbm_to_vmem [thread:$0]  %s0, 256, %s21, [#allocation4], 128, 128, 8
    $region5: #{tpu_custom_call.1} parent=1 // pred_fallthru
      _
    // Predicated region
    $region6: #{tpu_custom_call.1} parent=1 // pred_check
      _
    $region7: #{tpu_custom_call.1} parent=1 // pred_check_branch
      %28 = sbr.rel (0) target = $region9
    $region8: #{tpu_custom_call.1} parent=1 // pred_region
      %s30 = ssub.s32 256, 256
      %31 = vsyncadd [#allocation7], %s30
      %s32 = sshll.u32 [#allocation6], 4
      %s33 = int_to_ptr.vmem [resolvable:$true] %s32
      %38 = dma.hbm_to_vmem [thread:$0]  %s1, 256, %s33, [#allocation7], 128, 128, 8
    $region9: #{tpu_custom_call.1} parent=1 // pred_fallthru
      _
    // Predicated region
    $region10: #{tpu_custom_call.1} parent=1 // pred_check
      _
    $region11: #{tpu_custom_call.1} parent=1 // pred_check_branch
      %40 = sbr.rel (0) target = $region13
    $region12: #{tpu_custom_call.1} parent=1 // pred_region
      %s42 = ssub.s32 256, 256
      %43 = vsyncadd [#allocation7], %s42
      %s44 = sshll.u32 [#allocation8], 4
      %s45 = int_to_ptr.vmem [resolvable:$true] %s44
      %50 = dma.hbm_to_vmem [thread:$0]  %s2, 256, %s45, [#allocation7], 128, 128, 8
    $region13: #{tpu_custom_call.1} parent=1 // pred_fallthru
      _
    // Predicated region
    $region14: #{tpu_custom_call.1} parent=1 // pred_check
      _
    $region15: #{tpu_custom_call.1} parent=1 // pred_check_branch
      %52 = sbr.rel (0) target = $region17
    $region16: #{tpu_custom_call.1} parent=1 // pred_region
      %s54 = ssub.s32 256, 256
      %55 = vsyncadd [#allocation10], %s54
      %s56 = sshll.u32 [#allocation9], 4
      %s57 = int_to_ptr.vmem [resolvable:$true] %s56
      %62 = dma.hbm_to_vmem [thread:$0]  %s3, 256, %s57, [#allocation10], 128, 128, 8
    $region17: #{tpu_custom_call.1} parent=1 // pred_fallthru
      _
    // Predicated region
    $region18: #{tpu_custom_call.1} parent=1 // pred_check
      _
    $region19: #{tpu_custom_call.1} parent=1 // pred_check_branch
      %64 = sbr.rel (0) target = $region21
    $region20: #{tpu_custom_call.1} parent=1 // pred_region
      %s66 = ssub.s32 2048, 2048
      %67 = vsyncadd [#allocation10], %s66
      %s68 = sshll.u32 [#allocation11], 4
      %s69 = int_to_ptr.vmem [resolvable:$true] %s68
      %74 = dma.hbm_to_vmem [thread:$0]  %s4, 2048, %s69, [#allocation10], 128, 128, 8
    $region21: #{tpu_custom_call.1} parent=1 // pred_fallthru
      _
    // Predicated region
    $region22: #{tpu_custom_call.1} parent=1 // pred_check
      _
    $region23: #{tpu_custom_call.1} parent=1 // pred_check_branch
      %76 = sbr.rel (0) target = $region25
    $region24: #{tpu_custom_call.1} parent=1 // pred_region
      _
    $region25: #{tpu_custom_call.1} parent=1 // pred_fallthru
      _
    // Predicated region
    $region26: #{tpu_custom_call.1} parent=1 // pred_check
      _
    $region27: #{tpu_custom_call.1} parent=1 // pred_check_branch
      %78 = sbr.rel (0) target = $region29
    $region28: #{tpu_custom_call.1} parent=1 // pred_region
      %79 = dma.done [#allocation4], 256
    $region29: #{tpu_custom_call.1} parent=1 // pred_fallthru
      _
    // Predicated region
    $region30: #{tpu_custom_call.1} parent=1 // pred_check
      _
    $region31: #{tpu_custom_call.1} parent=1 // pred_check_branch
      %81 = sbr.rel (0) target = $region33
    $region32: #{tpu_custom_call.1} parent=1 // pred_region
      %82 = dma.done [#allocation7], 256
    $region33: #{tpu_custom_call.1} parent=1 // pred_fallthru
      _
    // Predicated region
    $region34: #{tpu_custom_call.1} parent=1 // pred_check
      _
    $region35: #{tpu_custom_call.1} parent=1 // pred_check_branch
      %84 = sbr.rel (0) target = $region37
    $region36: #{tpu_custom_call.1} parent=1 // pred_region
      %85 = dma.done [#allocation7], 256
    $region37: #{tpu_custom_call.1} parent=1 // pred_fallthru
      _
    // Predicated region
    $region38: #{tpu_custom_call.1} parent=1 // pred_check
      _
    $region39: #{tpu_custom_call.1} parent=1 // pred_check_branch
      %87 = sbr.rel (0) target = $region41
    $region40: #{tpu_custom_call.1} parent=1 // pred_region
      %88 = dma.done [#allocation10], 256
    $region41: #{tpu_custom_call.1} parent=1 // pred_fallthru
      _
    // Predicated region
    $region42: #{tpu_custom_call.1} parent=1 // pred_check
      _
    $region43: #{tpu_custom_call.1} parent=1 // pred_check_branch
      %90 = sbr.rel (0) target = $region45
    $region44: #{tpu_custom_call.1} parent=1 // pred_region
      %91 = dma.done [#allocation10], 2048
    $region45: #{tpu_custom_call.1} parent=1 // pred_fallthru
      _
    %v92 = vld [vmem:[#allocation3] sm:$0xff]
    %v93 = vld [vmem:[#allocation3 + $0x8] sm:$0xff]
    %v94 = vld [vmem:[#allocation6] sm:$0xff]
    %v95 = vld [vmem:[#allocation6 + $0x8] sm:$0xff]
    %v96 = vld [vmem:[#allocation8] sm:$0xff]
    %v97 = vld [vmem:[#allocation8 + $0x8] sm:$0xff]
    %v98 = vld [vmem:[%s5] sm:$0xf]
    %v99 = vld [vmem:[#allocation11] sm:$0xff]
    %v100 = vld [vmem:[#allocation11 + $0x8] sm:$0xff]
    %v101 = vld [vmem:[#allocation11 + $0x10] sm:$0xff]
    %v102 = vld [vmem:[#allocation11 + $0x18] sm:$0xff]
    %v103 = vlaneseq
    %v104 = vshrl.u32 %v103, 7
    %v105 = vsub.s32 0, %v104
    %v106 = vrot.slane %v98, %v105
    %vm107 = vcmask 261120
    %v109 = vsel %vm107, %v92, 0
    %v112 = vsel %vm107, %v93, 0
    %114 = vmatprep.subr.mxu0 0.0
    %115 = vmatpush1.msra.mxu0 0.0
    %116 = vmatprep.subr.mxu0 0.0
    %117 = vmatpush1.msra.mxu0 0.0
    %118 = vmatprep.subr.mxu0 0.0
    %119 = vmatpush1.msra.mxu0 0.0
    %120 = vmatprep.subr.mxu0 0.0
    %121 = vmatpush1.msra.mxu0 0.0
    %122 = vmatprep.subr.mxu0 0.0
    %123 = vmatpush1.msra.mxu0 0.0
    %124 = vmatprep.subr.mxu0 0.0
    %125 = vmatpush1.msra.mxu0 0.0
    %126 = vmatprep.subr.mxu0 0.0
    %127 = vmatpush1.msra.mxu0 0.0
    %128 = vmatprep.subr.mxu0 0.0
    %129 = vmatpush1.msra.mxu0 0.0
    %130 = vmatprep.subr.mxu0 0.0
    %131 = vmatpush1.msra.mxu0 0.0
    %132 = vmatprep.subr.mxu0 0.0
    %133 = vmatpush1.msra.mxu0 0.0
    %134 = vmatprep.subr.mxu0 0.0
    %135 = vmatpush1.msra.mxu0 0.0
    %136 = vmatprep.subr.mxu0 0.0
    %137 = vmatpush1.msra.mxu0 0.0
    %138 = vmatprep.subr.mxu0 0.0
    %139 = vmatpush1.msra.mxu0 %v102
    %140 = vmatprep.subr.mxu0 0.0
    %141 = vmatpush1.msra.mxu0 %v101
    %142 = vmatprep.subr.mxu0 0.0
    %143 = vmatpush1.msra.mxu0 %v100
    %144 = vmatprep.subr.mxu0 0.0
    %145 = vmatpush1.msra.mxu0 %v99
    %146 = vmatprep.subr.mxu0 0.0
    %147 = vmatpush2.msra.mxu0 0.0
    %148 = vmatprep.subr.mxu0 0.0
    %149 = vmatpush2.msra.mxu0 0.0
    %150 = vmatprep.subr.mxu0 0.0
    %151 = vmatpush2.msra.mxu0 0.0
    %152 = vmatprep.subr.mxu0 0.0
    %153 = vmatpush2.msra.mxu0 0.0
    %154 = vmatprep.subr.mxu0 0.0
    %155 = vmatpush2.msra.mxu0 0.0
    %156 = vmatprep.subr.mxu0 0.0
    %157 = vmatpush2.msra.mxu0 0.0
    %158 = vmatprep.subr.mxu0 0.0
    %159 = vmatpush2.msra.mxu0 0.0
    %160 = vmatprep.subr.mxu0 0.0
    %161 = vmatpush2.msra.mxu0 0.0
    %162 = vmatprep.subr.mxu0 0.0
    %163 = vmatpush2.msra.mxu0 0.0
    %164 = vmatprep.subr.mxu0 0.0
    %165 = vmatpush2.msra.mxu0 0.0
    %166 = vmatprep.subr.mxu0 0.0
    %167 = vmatpush2.msra.mxu0 0.0
    %168 = vmatprep.subr.mxu0 0.0
    %169 = vmatpush2.msra.mxu0 0.0
    %170 = vmatprep.subr.mxu0 0.0
    %171 = vmatpush2.msra.mxu0 0.0
    %172 = vmatprep.subr.mxu0 0.0
    %173 = vmatpush2.msra.mxu0 0.0
    %174 = vmatprep.subr.mxu0 0.0
    %175 = vmatpush2.msra.mxu0 0.0
    %176 = vmatprep.subr.mxu0 0.0
    %177 = vmatpush2.msra.mxu0 0.0
    %178 = vmatprep.mubr.f32.mxu0 0.0
    %179 = vmatmul.mubr.f32.gmra.mxu0 %v109
    %v180 = vpop.f32.mrf.mxu0
    %v181 = vadd.f32 %v106, %v180
    %v182 = vpop.f32.mrf.mxu0
    %183 = vmatprep.mubr.f32.mxu0 0.0
    %184 = vmatmul.mubr.f32.gmra.mxu0 %v112
    %v185 = vpop.f32.mrf.mxu0
    %v186 = vadd.f32 %v106, %v185
    %v187 = vpop.f32.mrf.mxu0
    %188 = vdwg.mxu0
    %v189 = vmul.f32 %v181, 0.35355338
    %v190 = vmul.f32 %v186, 0.35355338
    %s191 = scalar_lea.vmem [#allocation11], 32
    %v192 = vld [vmem:[%s191] sm:$0xff]
    %v193 = vld [vmem:[%s191 + $0x8] sm:$0xff]
    %v194 = vld [vmem:[%s191 + $0x10] sm:$0xff]
    %v195 = vld [vmem:[%s191 + $0x18] sm:$0xff]
    %v196 = vlaneseq
    %v197 = vshrl.u32 %v196, 7
    %v198 = vsub.s32 1, %v197
    %v199 = vrot.slane %v98, %v198
    %v201 = vsel %vm107, %v94, 0
    %v204 = vsel %vm107, %v95, 0
    %206 = vmatprep.subr.mxu0 0.0
    %207 = vmatpush1.msra.mxu0 0.0
    %208 = vmatprep.subr.mxu0 0.0
    %209 = vmatpush1.msra.mxu0 0.0
    %210 = vmatprep.subr.mxu0 0.0
    %211 = vmatpush1.msra.mxu0 0.0
    %212 = vmatprep.subr.mxu0 0.0
    %213 = vmatpush1.msra.mxu0 0.0
    %214 = vmatprep.subr.mxu0 0.0
    %215 = vmatpush1.msra.mxu0 0.0
    %216 = vmatprep.subr.mxu0 0.0
    %217 = vmatpush1.msra.mxu0 0.0
    %218 = vmatprep.subr.mxu0 0.0
    %219 = vmatpush1.msra.mxu0 0.0
    %220 = vmatprep.subr.mxu0 0.0
    %221 = vmatpush1.msra.mxu0 0.0
    %222 = vmatprep.subr.mxu0 0.0
    %223 = vmatpush1.msra.mxu0 0.0
    %224 = vmatprep.subr.mxu0 0.0
    %225 = vmatpush1.msra.mxu0 0.0
    %226 = vmatprep.subr.mxu0 0.0
    %227 = vmatpush1.msra.mxu0 0.0
    %228 = vmatprep.subr.mxu0 0.0
    %229 = vmatpush1.msra.mxu0 0.0
    %230 = vmatprep.subr.mxu0 0.0
    %231 = vmatpush1.msra.mxu0 %v195
    %232 = vmatprep.subr.mxu0 0.0
    %233 = vmatpush1.msra.mxu0 %v194
    %234 = vmatprep.subr.mxu0 0.0
    %235 = vmatpush1.msra.mxu0 %v193
    %236 = vmatprep.subr.mxu0 0.0
    %237 = vmatpush1.msra.mxu0 %v192
    %238 = vmatprep.subr.mxu0 0.0
    %239 = vmatpush2.msra.mxu0 0.0
    %240 = vmatprep.subr.mxu0 0.0
    %241 = vmatpush2.msra.mxu0 0.0
    %242 = vmatprep.subr.mxu0 0.0
    %243 = vmatpush2.msra.mxu0 0.0
    %244 = vmatprep.subr.mxu0 0.0
    %245 = vmatpush2.msra.mxu0 0.0
    %246 = vmatprep.subr.mxu0 0.0
    %247 = vmatpush2.msra.mxu0 0.0
    %248 = vmatprep.subr.mxu0 0.0
    %249 = vmatpush2.msra.mxu0 0.0
    %250 = vmatprep.subr.mxu0 0.0
    %251 = vmatpush2.msra.mxu0 0.0
    %252 = vmatprep.subr.mxu0 0.0
    %253 = vmatpush2.msra.mxu0 0.0
    %254 = vmatprep.subr.mxu0 0.0
    %255 = vmatpush2.msra.mxu0 0.0
    %256 = vmatprep.subr.mxu0 0.0
    %257 = vmatpush2.msra.mxu0 0.0
    %258 = vmatprep.subr.mxu0 0.0
    %259 = vmatpush2.msra.mxu0 0.0
    %260 = vmatprep.subr.mxu0 0.0
    %261 = vmatpush2.msra.mxu0 0.0
    %262 = vmatprep.subr.mxu0 0.0
    %263 = vmatpush2.msra.mxu0 0.0
    %264 = vmatprep.subr.mxu0 0.0
    %265 = vmatpush2.msra.mxu0 0.0
    %266 = vmatprep.subr.mxu0 0.0
    %267 = vmatpush2.msra.mxu0 0.0
    %268 = vmatprep.subr.mxu0 0.0
    %269 = vmatpush2.msra.mxu0 0.0
    %270 = vmatprep.mubr.f32.mxu0 0.0
    %271 = vmatmul.mubr.f32.gmra.mxu0 %v201
    %v272 = vpop.f32.mrf.mxu0
    %v273 = vadd.f32 %v199, %v272
    %v274 = vpop.f32.mrf.mxu0
    %275 = vmatprep.mubr.f32.mxu0 0.0
    %276 = vmatmul.mubr.f32.gmra.mxu0 %v204
    %v277 = vpop.f32.mrf.mxu0
    %v278 = vadd.f32 %v199, %v277
    %v279 = vpop.f32.mrf.mxu0
    %280 = vdwg.mxu0
    %s281 = scalar_lea.vmem [#allocation11], 64
    %v282 = vld [vmem:[%s281] sm:$0xff]
    %v283 = vld [vmem:[%s281 + $0x8] sm:$0xff]
    %v284 = vld [vmem:[%s281 + $0x10] sm:$0xff]
    %v285 = vld [vmem:[%s281 + $0x18] sm:$0xff]
    %v286 = vlaneseq
    %v287 = vshrl.u32 %v286, 7
    %v288 = vsub.s32 2, %v287
    %v289 = vrot.slane %v98, %v288
    %v291 = vsel %vm107, %v96, 0
    %v294 = vsel %vm107, %v97, 0
    %296 = vmatprep.subr.mxu0 0.0
    %297 = vmatpush1.msra.mxu0 0.0
    %298 = vmatprep.subr.mxu0 0.0
    %299 = vmatpush1.msra.mxu0 0.0
    %300 = vmatprep.subr.mxu0 0.0
    %301 = vmatpush1.msra.mxu0 0.0
    %302 = vmatprep.subr.mxu0 0.0
    %303 = vmatpush1.msra.mxu0 0.0
    %304 = vmatprep.subr.mxu0 0.0
    %305 = vmatpush1.msra.mxu0 0.0
    %306 = vmatprep.subr.mxu0 0.0
    %307 = vmatpush1.msra.mxu0 0.0
    %308 = vmatprep.subr.mxu0 0.0
    %309 = vmatpush1.msra.mxu0 0.0
    %310 = vmatprep.subr.mxu0 0.0
    %311 = vmatpush1.msra.mxu0 0.0
    %312 = vmatprep.subr.mxu0 0.0
    %313 = vmatpush1.msra.mxu0 0.0
    %314 = vmatprep.subr.mxu0 0.0
    %315 = vmatpush1.msra.mxu0 0.0
    %316 = vmatprep.subr.mxu0 0.0
    %317 = vmatpush1.msra.mxu0 0.0
    %318 = vmatprep.subr.mxu0 0.0
    %319 = vmatpush1.msra.mxu0 0.0
    %320 = vmatprep.subr.mxu0 0.0
    %321 = vmatpush1.msra.mxu0 %v285
    %322 = vmatprep.subr.mxu0 0.0
    %323 = vmatpush1.msra.mxu0 %v284
    %324 = vmatprep.subr.mxu0 0.0
    %325 = vmatpush1.msra.mxu0 %v283
    %326 = vmatprep.subr.mxu0 0.0
    %327 = vmatpush1.msra.mxu0 %v282
    %328 = vmatprep.subr.mxu0 0.0
    %329 = vmatpush2.msra.mxu0 0.0
    %330 = vmatprep.subr.mxu0 0.0
    %331 = vmatpush2.msra.mxu0 0.0
    %332 = vmatprep.subr.mxu0 0.0
    %333 = vmatpush2.msra.mxu0 0.0
    %334 = vmatprep.subr.mxu0 0.0
    %335 = vmatpush2.msra.mxu0 0.0
    %336 = vmatprep.subr.mxu0 0.0
    %337 = vmatpush2.msra.mxu0 0.0
    %338 = vmatprep.subr.mxu0 0.0
    %339 = vmatpush2.msra.mxu0 0.0
    %340 = vmatprep.subr.mxu0 0.0
    %341 = vmatpush2.msra.mxu0 0.0
    %342 = vmatprep.subr.mxu0 0.0
    %343 = vmatpush2.msra.mxu0 0.0
    %344 = vmatprep.subr.mxu0 0.0
    %345 = vmatpush2.msra.mxu0 0.0
    %346 = vmatprep.subr.mxu0 0.0
    %347 = vmatpush2.msra.mxu0 0.0
    %348 = vmatprep.subr.mxu0 0.0
    %349 = vmatpush2.msra.mxu0 0.0
    %350 = vmatprep.subr.mxu0 0.0
    %351 = vmatpush2.msra.mxu0 0.0
    %352 = vmatprep.subr.mxu0 0.0
    %353 = vmatpush2.msra.mxu0 0.0
    %354 = vmatprep.subr.mxu0 0.0
    %355 = vmatpush2.msra.mxu0 0.0
    %356 = vmatprep.subr.mxu0 0.0
    %357 = vmatpush2.msra.mxu0 0.0
    %358 = vmatprep.subr.mxu0 0.0
    %359 = vmatpush2.msra.mxu0 0.0
    %360 = vmatprep.mubr.f32.mxu0 0.0
    %361 = vmatmul.mubr.f32.gmra.mxu0 %v291
    %v362 = vpop.f32.mrf.mxu0
    %v363 = vadd.f32 %v289, %v362
    %v364 = vpop.f32.mrf.mxu0
    %365 = vmatprep.mubr.f32.mxu0 0.0
    %366 = vmatmul.mubr.f32.gmra.mxu0 %v294
    %v367 = vpop.f32.mrf.mxu0
    %v368 = vadd.f32 %v289, %v367
    %v369 = vpop.f32.mrf.mxu0
    %370 = vdwg.mxu0
    %v371 = vld [vmem:[#allocation9] sm:$0xff]
    %v372 = vld [vmem:[#allocation9 + $0x8] sm:$0xff]
    %vm373 = vcmp.eq.f32.partialorder %v371, 0.0
    %vm374 = vcmp.eq.f32.partialorder %v372, 0.0
    %v375 = vsel %vm373, -1e+20, 0.0
    %v376 = vsel %vm374, -1e+20, 0.0
    %vm377 = vcmask 64512
    %v379 = vsel %vm377, %v189, 0
    %v382 = vsel %vm377, %v273, 0
    %384 = vmatprep.subr.mxu0 0.0
    %385 = vmatpush1.xpose.msra.mxu0 0.0
    %386 = vmatprep.subr.mxu0 0.0
    %387 = vmatpush1.xpose.msra.mxu0 0.0
    %388 = vmatprep.subr.mxu0 0.0
    %389 = vmatpush1.xpose.msra.mxu0 0.0
    %390 = vmatprep.subr.mxu0 0.0
    %391 = vmatpush1.xpose.msra.mxu0 0.0
    %392 = vmatprep.subr.mxu0 0.0
    %393 = vmatpush1.xpose.msra.mxu0 0.0
    %394 = vmatprep.subr.mxu0 0.0
    %395 = vmatpush1.xpose.msra.mxu0 0.0
    %396 = vmatprep.subr.mxu0 0.0
    %397 = vmatpush1.xpose.msra.mxu0 0.0
    %398 = vmatprep.subr.mxu0 0.0
    %399 = vmatpush1.xpose.msra.mxu0 0.0
    %400 = vmatprep.subr.mxu0 0.0
    %401 = vmatpush1.xpose.msra.mxu0 0.0
    %402 = vmatprep.subr.mxu0 0.0
    %403 = vmatpush1.xpose.msra.mxu0 0.0
    %404 = vmatprep.subr.mxu0 0.0
    %405 = vmatpush1.xpose.msra.mxu0 0.0
    %406 = vmatprep.subr.mxu0 0.0
    %407 = vmatpush1.xpose.msra.mxu0 0.0
    %408 = vmatprep.subr.mxu0 0.0
    %409 = vmatpush1.xpose.msra.mxu0 0.0
    %410 = vmatprep.subr.mxu0 0.0
    %411 = vmatpush1.xpose.msra.mxu0 0.0
    %412 = vmatprep.subr.mxu0 0.0
    %413 = vmatpush1.xpose.msra.mxu0 0.0
    %414 = vmatprep.subr.mxu0 0.0
    %415 = vmatpush1.xpose.msra.mxu0 %v382
    %416 = vmatprep.subr.mxu0 0.0
    %417 = vmatpush2.xpose.msra.mxu0 0.0
    %418 = vmatprep.subr.mxu0 0.0
    %419 = vmatpush2.xpose.msra.mxu0 0.0
    %420 = vmatprep.subr.mxu0 0.0
    %421 = vmatpush2.xpose.msra.mxu0 0.0
    %422 = vmatprep.subr.mxu0 0.0
    %423 = vmatpush2.xpose.msra.mxu0 0.0
    %424 = vmatprep.subr.mxu0 0.0
    %425 = vmatpush2.xpose.msra.mxu0 0.0
    %426 = vmatprep.subr.mxu0 0.0
    %427 = vmatpush2.xpose.msra.mxu0 0.0
    %428 = vmatprep.subr.mxu0 0.0
    %429 = vmatpush2.xpose.msra.mxu0 0.0
    %430 = vmatprep.subr.mxu0 0.0
    %431 = vmatpush2.xpose.msra.mxu0 0.0
    %432 = vmatprep.subr.mxu0 0.0
    %433 = vmatpush2.xpose.msra.mxu0 0.0
    %434 = vmatprep.subr.mxu0 0.0
    %435 = vmatpush2.xpose.msra.mxu0 0.0
    %436 = vmatprep.subr.mxu0 0.0
    %437 = vmatpush2.xpose.msra.mxu0 0.0
    %438 = vmatprep.subr.mxu0 0.0
    %439 = vmatpush2.xpose.msra.mxu0 0.0
    %440 = vmatprep.subr.mxu0 0.0
    %441 = vmatpush2.xpose.msra.mxu0 0.0
    %442 = vmatprep.subr.mxu0 0.0
    %443 = vmatpush2.xpose.msra.mxu0 0.0
    %444 = vmatprep.subr.mxu0 0.0
    %445 = vmatpush2.xpose.msra.mxu0 0.0
    %446 = vmatprep.subr.mxu0 0.0
    %447 = vmatpush2.xpose.msra.mxu0 0.0
    %448 = vmatprep.mubr.f32.mxu0 0.0
    %449 = vmatmul.mubr.f32.gmra.mxu0 %v379
    %v450 = vpop.f32.mrf.mxu0
    %v451 = vadd.f32 %v375, %v450
    %v452 = vpop.f32.mrf.mxu0
    %453 = vdwg.mxu0
    %v455 = vsel %vm377, %v190, 0
    %v458 = vsel %vm377, %v278, 0
    %460 = vmatprep.subr.mxu0 0.0
    %461 = vmatpush1.xpose.msra.mxu0 0.0
    %462 = vmatprep.subr.mxu0 0.0
    %463 = vmatpush1.xpose.msra.mxu0 0.0
    %464 = vmatprep.subr.mxu0 0.0
    %465 = vmatpush1.xpose.msra.mxu0 0.0
    %466 = vmatprep.subr.mxu0 0.0
    %467 = vmatpush1.xpose.msra.mxu0 0.0
    %468 = vmatprep.subr.mxu0 0.0
    %469 = vmatpush1.xpose.msra.mxu0 0.0
    %470 = vmatprep.subr.mxu0 0.0
    %471 = vmatpush1.xpose.msra.mxu0 0.0
    %472 = vmatprep.subr.mxu0 0.0
    %473 = vmatpush1.xpose.msra.mxu0 0.0
    %474 = vmatprep.subr.mxu0 0.0
    %475 = vmatpush1.xpose.msra.mxu0 0.0
    %476 = vmatprep.subr.mxu0 0.0
    %477 = vmatpush1.xpose.msra.mxu0 0.0
    %478 = vmatprep.subr.mxu0 0.0
    %479 = vmatpush1.xpose.msra.mxu0 0.0
    %480 = vmatprep.subr.mxu0 0.0
    %481 = vmatpush1.xpose.msra.mxu0 0.0
    %482 = vmatprep.subr.mxu0 0.0
    %483 = vmatpush1.xpose.msra.mxu0 0.0
    %484 = vmatprep.subr.mxu0 0.0
    %485 = vmatpush1.xpose.msra.mxu0 0.0
    %486 = vmatprep.subr.mxu0 0.0
    %487 = vmatpush1.xpose.msra.mxu0 0.0
    %488 = vmatprep.subr.mxu0 0.0
    %489 = vmatpush1.xpose.msra.mxu0 0.0
    %490 = vmatprep.subr.mxu0 0.0
    %491 = vmatpush1.xpose.msra.mxu0 %v458
    %492 = vmatprep.subr.mxu0 0.0
    %493 = vmatpush2.xpose.msra.mxu0 0.0
    %494 = vmatprep.subr.mxu0 0.0
    %495 = vmatpush2.xpose.msra.mxu0 0.0
    %496 = vmatprep.subr.mxu0 0.0
    %497 = vmatpush2.xpose.msra.mxu0 0.0
    %498 = vmatprep.subr.mxu0 0.0
    %499 = vmatpush2.xpose.msra.mxu0 0.0
    %500 = vmatprep.subr.mxu0 0.0
    %501 = vmatpush2.xpose.msra.mxu0 0.0
    %502 = vmatprep.subr.mxu0 0.0
    %503 = vmatpush2.xpose.msra.mxu0 0.0
    %504 = vmatprep.subr.mxu0 0.0
    %505 = vmatpush2.xpose.msra.mxu0 0.0
    %506 = vmatprep.subr.mxu0 0.0
    %507 = vmatpush2.xpose.msra.mxu0 0.0
    %508 = vmatprep.subr.mxu0 0.0
    %509 = vmatpush2.xpose.msra.mxu0 0.0
    %510 = vmatprep.subr.mxu0 0.0
    %511 = vmatpush2.xpose.msra.mxu0 0.0
    %512 = vmatprep.subr.mxu0 0.0
    %513 = vmatpush2.xpose.msra.mxu0 0.0
    %514 = vmatprep.subr.mxu0 0.0
    %515 = vmatpush2.xpose.msra.mxu0 0.0
    %516 = vmatprep.subr.mxu0 0.0
    %517 = vmatpush2.xpose.msra.mxu0 0.0
    %518 = vmatprep.subr.mxu0 0.0
    %519 = vmatpush2.xpose.msra.mxu0 0.0
    %520 = vmatprep.subr.mxu0 0.0
    %521 = vmatpush2.xpose.msra.mxu0 0.0
    %522 = vmatprep.subr.mxu0 0.0
    %523 = vmatpush2.xpose.msra.mxu0 0.0
    %524 = vmatprep.mubr.f32.mxu0 0.0
    %525 = vmatmul.mubr.f32.gmra.mxu0 %v455
    %v526 = vpop.f32.mrf.mxu0
    %v527 = vadd.f32 %v376, %v526
    %v528 = vpop.f32.mrf.mxu0
    %529 = vdwg.mxu0
    %v530 = vsel %vm377, %v451, -inf
    %531 = vmax.xlane.f32.xlu0 %v530
    %v532 = vpop.xlane.xlu0 %531
    %v533 = vsel %vm377, %v527, -inf
    %534 = vmax.xlane.f32.xlu0 %v533
    %v535 = vpop.xlane.xlu0 %534
    %v536 = vsub.f32 %v451, %v532
    %v537 = vsub.f32 %v527, %v535
    %v538 = vmul.f32 %v536, 1.442695
    %v539 = vpow.pop %v538
    %v540 = vmul.f32 %v537, 1.442695
    %v541 = vpow.pop %v540
    %v542 = vsel %vm377, %v539, 0.0
    %543 = vadd.xlane.f32.xlu0 %v542
    %v544 = vpop.xlane.xlu0 %543
    %v545 = vsel %vm377, %v541, 0.0
    %546 = vadd.xlane.f32.xlu0 %v545
    %v547 = vpop.xlane.xlu0 %546
    %v548 = vrcp.pop %v544
    %v549 = vrcp.pop %v547
    %v550 = vmul.f32 %v539, %v548
    %v551 = vmul.f32 %v541, %v549
    %v553 = vsel %vm377, %v550, 0
    %555 = vmatprep.subr.mxu0 0.0
    %556 = vmatpush1.msra.mxu0 0.0
    %557 = vmatprep.subr.mxu0 0.0
    %558 = vmatpush1.msra.mxu0 0.0
    %559 = vmatprep.subr.mxu0 0.0
    %560 = vmatpush1.msra.mxu0 0.0
    %561 = vmatprep.subr.mxu0 0.0
    %562 = vmatpush1.msra.mxu0 0.0
    %563 = vmatprep.subr.mxu0 0.0
    %564 = vmatpush1.msra.mxu0 0.0
    %565 = vmatprep.subr.mxu0 0.0
    %566 = vmatpush1.msra.mxu0 0.0
    %567 = vmatprep.subr.mxu0 0.0
    %568 = vmatpush1.msra.mxu0 0.0
    %569 = vmatprep.subr.mxu0 0.0
    %570 = vmatpush1.msra.mxu0 0.0
    %571 = vmatprep.subr.mxu0 0.0
    %572 = vmatpush1.msra.mxu0 0.0
    %573 = vmatprep.subr.mxu0 0.0
    %574 = vmatpush1.msra.mxu0 0.0
    %575 = vmatprep.subr.mxu0 0.0
    %576 = vmatpush1.msra.mxu0 0.0
    %577 = vmatprep.subr.mxu0 0.0
    %578 = vmatpush1.msra.mxu0 0.0
    %579 = vmatprep.subr.mxu0 0.0
    %580 = vmatpush1.msra.mxu0 0.0
    %581 = vmatprep.subr.mxu0 0.0
    %582 = vmatpush1.msra.mxu0 0.0
    %583 = vmatprep.subr.mxu0 0.0
    %584 = vmatpush1.msra.mxu0 0.0
    %585 = vmatprep.subr.mxu0 0.0
    %586 = vmatpush1.msra.mxu0 %v363
    %587 = vmatprep.subr.mxu0 0.0
    %588 = vmatpush2.msra.mxu0 0.0
    %589 = vmatprep.subr.mxu0 0.0
    %590 = vmatpush2.msra.mxu0 0.0
    %591 = vmatprep.subr.mxu0 0.0
    %592 = vmatpush2.msra.mxu0 0.0
    %593 = vmatprep.subr.mxu0 0.0
    %594 = vmatpush2.msra.mxu0 0.0
    %595 = vmatprep.subr.mxu0 0.0
    %596 = vmatpush2.msra.mxu0 0.0
    %597 = vmatprep.subr.mxu0 0.0
    %598 = vmatpush2.msra.mxu0 0.0
    %599 = vmatprep.subr.mxu0 0.0
    %600 = vmatpush2.msra.mxu0 0.0
    %601 = vmatprep.subr.mxu0 0.0
    %602 = vmatpush2.msra.mxu0 0.0
    %603 = vmatprep.subr.mxu0 0.0
    %604 = vmatpush2.msra.mxu0 0.0
    %605 = vmatprep.subr.mxu0 0.0
    %606 = vmatpush2.msra.mxu0 0.0
    %607 = vmatprep.subr.mxu0 0.0
    %608 = vmatpush2.msra.mxu0 0.0
    %609 = vmatprep.subr.mxu0 0.0
    %610 = vmatpush2.msra.mxu0 0.0
    %611 = vmatprep.subr.mxu0 0.0
    %612 = vmatpush2.msra.mxu0 0.0
    %613 = vmatprep.subr.mxu0 0.0
    %614 = vmatpush2.msra.mxu0 0.0
    %615 = vmatprep.subr.mxu0 0.0
    %616 = vmatpush2.msra.mxu0 0.0
    %617 = vmatprep.subr.mxu0 0.0
    %618 = vmatpush2.msra.mxu0 0.0
    %619 = vmatprep.mubr.f32.mxu0 0.0
    %620 = vmatmul.mubr.f32.gmra.mxu0 %v553
    %v621 = vpop.f32.mrf.mxu0
    %v622 = vadd.f32 0.0, %v621
    %v623 = vpop.f32.mrf.mxu0
    %624 = vdwg.mxu0
    %v626 = vsel %vm377, %v551, 0
    %628 = vmatprep.subr.mxu0 0.0
    %629 = vmatpush1.msra.mxu0 0.0
    %630 = vmatprep.subr.mxu0 0.0
    %631 = vmatpush1.msra.mxu0 0.0
    %632 = vmatprep.subr.mxu0 0.0
    %633 = vmatpush1.msra.mxu0 0.0
    %634 = vmatprep.subr.mxu0 0.0
    %635 = vmatpush1.msra.mxu0 0.0
    %636 = vmatprep.subr.mxu0 0.0
    %637 = vmatpush1.msra.mxu0 0.0
    %638 = vmatprep.subr.mxu0 0.0
    %639 = vmatpush1.msra.mxu0 0.0
    %640 = vmatprep.subr.mxu0 0.0
    %641 = vmatpush1.msra.mxu0 0.0
    %642 = vmatprep.subr.mxu0 0.0
    %643 = vmatpush1.msra.mxu0 0.0
    %644 = vmatprep.subr.mxu0 0.0
    %645 = vmatpush1.msra.mxu0 0.0
    %646 = vmatprep.subr.mxu0 0.0
    %647 = vmatpush1.msra.mxu0 0.0
    %648 = vmatprep.subr.mxu0 0.0
    %649 = vmatpush1.msra.mxu0 0.0
    %650 = vmatprep.subr.mxu0 0.0
    %651 = vmatpush1.msra.mxu0 0.0
    %652 = vmatprep.subr.mxu0 0.0
    %653 = vmatpush1.msra.mxu0 0.0
    %654 = vmatprep.subr.mxu0 0.0
    %655 = vmatpush1.msra.mxu0 0.0
    %656 = vmatprep.subr.mxu0 0.0
    %657 = vmatpush1.msra.mxu0 0.0
    %658 = vmatprep.subr.mxu0 0.0
    %659 = vmatpush1.msra.mxu0 %v368
    %660 = vmatprep.subr.mxu0 0.0
    %661 = vmatpush2.msra.mxu0 0.0
    %662 = vmatprep.subr.mxu0 0.0
    %663 = vmatpush2.msra.mxu0 0.0
    %664 = vmatprep.subr.mxu0 0.0
    %665 = vmatpush2.msra.mxu0 0.0
    %666 = vmatprep.subr.mxu0 0.0
    %667 = vmatpush2.msra.mxu0 0.0
    %668 = vmatprep.subr.mxu0 0.0
    %669 = vmatpush2.msra.mxu0 0.0
    %670 = vmatprep.subr.mxu0 0.0
    %671 = vmatpush2.msra.mxu0 0.0
    %672 = vmatprep.subr.mxu0 0.0
    %673 = vmatpush2.msra.mxu0 0.0
    %674 = vmatprep.subr.mxu0 0.0
    %675 = vmatpush2.msra.mxu0 0.0
    %676 = vmatprep.subr.mxu0 0.0
    %677 = vmatpush2.msra.mxu0 0.0
    %678 = vmatprep.subr.mxu0 0.0
    %679 = vmatpush2.msra.mxu0 0.0
    %680 = vmatprep.subr.mxu0 0.0
    %681 = vmatpush2.msra.mxu0 0.0
    %682 = vmatprep.subr.mxu0 0.0
    %683 = vmatpush2.msra.mxu0 0.0
    %684 = vmatprep.subr.mxu0 0.0
    %685 = vmatpush2.msra.mxu0 0.0
    %686 = vmatprep.subr.mxu0 0.0
    %687 = vmatpush2.msra.mxu0 0.0
    %688 = vmatprep.subr.mxu0 0.0
    %689 = vmatpush2.msra.mxu0 0.0
    %690 = vmatprep.subr.mxu0 0.0
    %691 = vmatpush2.msra.mxu0 0.0
    %692 = vmatprep.mubr.f32.mxu0 0.0
    %693 = vmatmul.mubr.f32.gmra.mxu0 %v626
    %v694 = vpop.f32.mrf.mxu0
    %v695 = vadd.f32 0.0, %v694
    %v696 = vpop.f32.mrf.mxu0
    %697 = vdwg.mxu0
    %698 = vst.msk [vmem:[#allocation2] sm:$0xff] %vm377, %v622
    %699 = vst.msk [vmem:[#allocation2 + $0x8] sm:$0xff] %vm377, %v695
    %700 = vrot.lane.b32.xlu0 %v189, 120
    %v701 = vpop.permute.xlu0 %700
    %702 = vrot.lane.b32.xlu0 %v273, 120
    %v703 = vpop.permute.xlu0 %702
    %v704 = vsel %vm377, %v701, 0
    %v706 = vsel %vm377, %v703, 0
    %708 = vmatprep.subr.mxu0 0.0
    %709 = vmatpush1.xpose.msra.mxu0 0.0
    %710 = vmatprep.subr.mxu0 0.0
    %711 = vmatpush1.xpose.msra.mxu0 0.0
    %712 = vmatprep.subr.mxu0 0.0
    %713 = vmatpush1.xpose.msra.mxu0 0.0
    %714 = vmatprep.subr.mxu0 0.0
    %715 = vmatpush1.xpose.msra.mxu0 0.0
    %716 = vmatprep.subr.mxu0 0.0
    %717 = vmatpush1.xpose.msra.mxu0 0.0
    %718 = vmatprep.subr.mxu0 0.0
    %719 = vmatpush1.xpose.msra.mxu0 0.0
    %720 = vmatprep.subr.mxu0 0.0
    %721 = vmatpush1.xpose.msra.mxu0 0.0
    %722 = vmatprep.subr.mxu0 0.0
    %723 = vmatpush1.xpose.msra.mxu0 0.0
    %724 = vmatprep.subr.mxu0 0.0
    %725 = vmatpush1.xpose.msra.mxu0 0.0
    %726 = vmatprep.subr.mxu0 0.0
    %727 = vmatpush1.xpose.msra.mxu0 0.0
    %728 = vmatprep.subr.mxu0 0.0
    %729 = vmatpush1.xpose.msra.mxu0 0.0
    %730 = vmatprep.subr.mxu0 0.0
    %731 = vmatpush1.xpose.msra.mxu0 0.0
    %732 = vmatprep.subr.mxu0 0.0
    %733 = vmatpush1.xpose.msra.mxu0 0.0
    %734 = vmatprep.subr.mxu0 0.0
    %735 = vmatpush1.xpose.msra.mxu0 0.0
    %736 = vmatprep.subr.mxu0 0.0
    %737 = vmatpush1.xpose.msra.mxu0 0.0
    %738 = vmatprep.subr.mxu0 0.0
    %739 = vmatpush1.xpose.msra.mxu0 %v706
    %740 = vmatprep.subr.mxu0 0.0
    %741 = vmatpush2.xpose.msra.mxu0 0.0
    %742 = vmatprep.subr.mxu0 0.0
    %743 = vmatpush2.xpose.msra.mxu0 0.0
    %744 = vmatprep.subr.mxu0 0.0
    %745 = vmatpush2.xpose.msra.mxu0 0.0
    %746 = vmatprep.subr.mxu0 0.0
    %747 = vmatpush2.xpose.msra.mxu0 0.0
    %748 = vmatprep.subr.mxu0 0.0
    %749 = vmatpush2.xpose.msra.mxu0 0.0
    %750 = vmatprep.subr.mxu0 0.0
    %751 = vmatpush2.xpose.msra.mxu0 0.0
    %752 = vmatprep.subr.mxu0 0.0
    %753 = vmatpush2.xpose.msra.mxu0 0.0
    %754 = vmatprep.subr.mxu0 0.0
    %755 = vmatpush2.xpose.msra.mxu0 0.0
    %756 = vmatprep.subr.mxu0 0.0
    %757 = vmatpush2.xpose.msra.mxu0 0.0
    %758 = vmatprep.subr.mxu0 0.0
    %759 = vmatpush2.xpose.msra.mxu0 0.0
    %760 = vmatprep.subr.mxu0 0.0
    %761 = vmatpush2.xpose.msra.mxu0 0.0
    %762 = vmatprep.subr.mxu0 0.0
    %763 = vmatpush2.xpose.msra.mxu0 0.0
    %764 = vmatprep.subr.mxu0 0.0
    %765 = vmatpush2.xpose.msra.mxu0 0.0
    %766 = vmatprep.subr.mxu0 0.0
    %767 = vmatpush2.xpose.msra.mxu0 0.0
    %768 = vmatprep.subr.mxu0 0.0
    %769 = vmatpush2.xpose.msra.mxu0 0.0
    %770 = vmatprep.subr.mxu0 0.0
    %771 = vmatpush2.xpose.msra.mxu0 0.0
    %772 = vmatprep.mubr.f32.mxu0 0.0
    %773 = vmatmul.mubr.f32.gmra.mxu0 %v704
    %v774 = vpop.f32.mrf.mxu0
    %v775 = vadd.f32 %v375, %v774
    %v776 = vpop.f32.mrf.mxu0
    %777 = vdwg.mxu0
    %778 = vrot.lane.b32.xlu0 %v190, 120
    %v779 = vpop.permute.xlu0 %778
    %780 = vrot.lane.b32.xlu0 %v278, 120
    %v781 = vpop.permute.xlu0 %780
    %v782 = vsel %vm377, %v779, 0
    %v784 = vsel %vm377, %v781, 0
    %786 = vmatprep.subr.mxu0 0.0
    %787 = vmatpush1.xpose.msra.mxu0 0.0
    %788 = vmatprep.subr.mxu0 0.0
    %789 = vmatpush1.xpose.msra.mxu0 0.0
    %790 = vmatprep.subr.mxu0 0.0
    %791 = vmatpush1.xpose.msra.mxu0 0.0
    %792 = vmatprep.subr.mxu0 0.0
    %793 = vmatpush1.xpose.msra.mxu0 0.0
    %794 = vmatprep.subr.mxu0 0.0
    %795 = vmatpush1.xpose.msra.mxu0 0.0
    %796 = vmatprep.subr.mxu0 0.0
    %797 = vmatpush1.xpose.msra.mxu0 0.0
    %798 = vmatprep.subr.mxu0 0.0
    %799 = vmatpush1.xpose.msra.mxu0 0.0
    %800 = vmatprep.subr.mxu0 0.0
    %801 = vmatpush1.xpose.msra.mxu0 0.0
    %802 = vmatprep.subr.mxu0 0.0
    %803 = vmatpush1.xpose.msra.mxu0 0.0
    %804 = vmatprep.subr.mxu0 0.0
    %805 = vmatpush1.xpose.msra.mxu0 0.0
    %806 = vmatprep.subr.mxu0 0.0
    %807 = vmatpush1.xpose.msra.mxu0 0.0
    %808 = vmatprep.subr.mxu0 0.0
    %809 = vmatpush1.xpose.msra.mxu0 0.0
    %810 = vmatprep.subr.mxu0 0.0
    %811 = vmatpush1.xpose.msra.mxu0 0.0
    %812 = vmatprep.subr.mxu0 0.0
    %813 = vmatpush1.xpose.msra.mxu0 0.0
    %814 = vmatprep.subr.mxu0 0.0
    %815 = vmatpush1.xpose.msra.mxu0 0.0
    %816 = vmatprep.subr.mxu0 0.0
    %817 = vmatpush1.xpose.msra.mxu0 %v784
    %818 = vmatprep.subr.mxu0 0.0
    %819 = vmatpush2.xpose.msra.mxu0 0.0
    %820 = vmatprep.subr.mxu0 0.0
    %821 = vmatpush2.xpose.msra.mxu0 0.0
    %822 = vmatprep.subr.mxu0 0.0
    %823 = vmatpush2.xpose.msra.mxu0 0.0
    %824 = vmatprep.subr.mxu0 0.0
    %825 = vmatpush2.xpose.msra.mxu0 0.0
    %826 = vmatprep.subr.mxu0 0.0
    %827 = vmatpush2.xpose.msra.mxu0 0.0
    %828 = vmatprep.subr.mxu0 0.0
    %829 = vmatpush2.xpose.msra.mxu0 0.0
    %830 = vmatprep.subr.mxu0 0.0
    %831 = vmatpush2.xpose.msra.mxu0 0.0
    %832 = vmatprep.subr.mxu0 0.0
    %833 = vmatpush2.xpose.msra.mxu0 0.0
    %834 = vmatprep.subr.mxu0 0.0
    %835 = vmatpush2.xpose.msra.mxu0 0.0
    %836 = vmatprep.subr.mxu0 0.0
    %837 = vmatpush2.xpose.msra.mxu0 0.0
    %838 = vmatprep.subr.mxu0 0.0
    %839 = vmatpush2.xpose.msra.mxu0 0.0
    %840 = vmatprep.subr.mxu0 0.0
    %841 = vmatpush2.xpose.msra.mxu0 0.0
    %842 = vmatprep.subr.mxu0 0.0
    %843 = vmatpush2.xpose.msra.mxu0 0.0
    %844 = vmatprep.subr.mxu0 0.0
    %845 = vmatpush2.xpose.msra.mxu0 0.0
    %846 = vmatprep.subr.mxu0 0.0
    %847 = vmatpush2.xpose.msra.mxu0 0.0
    %848 = vmatprep.subr.mxu0 0.0
    %849 = vmatpush2.xpose.msra.mxu0 0.0
    %850 = vmatprep.mubr.f32.mxu0 0.0
    %851 = vmatmul.mubr.f32.gmra.mxu0 %v782
    %v852 = vpop.f32.mrf.mxu0
    %v853 = vadd.f32 %v376, %v852
    %v854 = vpop.f32.mrf.mxu0
    %855 = vdwg.mxu0
    %v856 = vsel %vm377, %v775, -inf
    %857 = vmax.xlane.f32.xlu0 %v856
    %v858 = vpop.xlane.xlu0 %857
    %v859 = vsel %vm377, %v853, -inf
    %860 = vmax.xlane.f32.xlu0 %v859
    %v861 = vpop.xlane.xlu0 %860
    %v862 = vsub.f32 %v775, %v858
    %v863 = vsub.f32 %v853, %v861
    %v864 = vmul.f32 %v862, 1.442695
    %v865 = vpow.pop %v864
    %v866 = vmul.f32 %v863, 1.442695
    %v867 = vpow.pop %v866
    %v868 = vsel %vm377, %v865, 0.0
    %869 = vadd.xlane.f32.xlu0 %v868
    %v870 = vpop.xlane.xlu0 %869
    %v871 = vsel %vm377, %v867, 0.0
    %872 = vadd.xlane.f32.xlu0 %v871
    %v873 = vpop.xlane.xlu0 %872
    %v874 = vrcp.pop %v870
    %v875 = vrcp.pop %v873
    %v876 = vmul.f32 %v865, %v874
    %v877 = vmul.f32 %v867, %v875
    %879 = vrot.lane.b32.xlu0 %v363, 120
    %v880 = vpop.permute.xlu0 %879
    %v883 = vsel %vm377, %v876, 0
    %885 = vmatprep.subr.mxu0 0.0
    %886 = vmatpush1.msra.mxu0 0.0
    %887 = vmatprep.subr.mxu0 0.0
    %888 = vmatpush1.msra.mxu0 0.0
    %889 = vmatprep.subr.mxu0 0.0
    %890 = vmatpush1.msra.mxu0 0.0
    %891 = vmatprep.subr.mxu0 0.0
    %892 = vmatpush1.msra.mxu0 0.0
    %893 = vmatprep.subr.mxu0 0.0
    %894 = vmatpush1.msra.mxu0 0.0
    %895 = vmatprep.subr.mxu0 0.0
    %896 = vmatpush1.msra.mxu0 0.0
    %897 = vmatprep.subr.mxu0 0.0
    %898 = vmatpush1.msra.mxu0 0.0
    %899 = vmatprep.subr.mxu0 0.0
    %900 = vmatpush1.msra.mxu0 0.0
    %901 = vmatprep.subr.mxu0 0.0
    %902 = vmatpush1.msra.mxu0 0.0
    %903 = vmatprep.subr.mxu0 0.0
    %904 = vmatpush1.msra.mxu0 0.0
    %905 = vmatprep.subr.mxu0 0.0
    %906 = vmatpush1.msra.mxu0 0.0
    %907 = vmatprep.subr.mxu0 0.0
    %908 = vmatpush1.msra.mxu0 0.0
    %909 = vmatprep.subr.mxu0 0.0
    %910 = vmatpush1.msra.mxu0 0.0
    %911 = vmatprep.subr.mxu0 0.0
    %912 = vmatpush1.msra.mxu0 0.0
    %913 = vmatprep.subr.mxu0 0.0
    %914 = vmatpush1.msra.mxu0 0.0
    %915 = vmatprep.subr.mxu0 0.0
    %916 = vmatpush1.msra.mxu0 %v880
    %917 = vmatprep.subr.mxu0 0.0
    %918 = vmatpush2.msra.mxu0 0.0
    %919 = vmatprep.subr.mxu0 0.0
    %920 = vmatpush2.msra.mxu0 0.0
    %921 = vmatprep.subr.mxu0 0.0
    %922 = vmatpush2.msra.mxu0 0.0
    %923 = vmatprep.subr.mxu0 0.0
    %924 = vmatpush2.msra.mxu0 0.0
    %925 = vmatprep.subr.mxu0 0.0
    %926 = vmatpush2.msra.mxu0 0.0
    %927 = vmatprep.subr.mxu0 0.0
    %928 = vmatpush2.msra.mxu0 0.0
    %929 = vmatprep.subr.mxu0 0.0
    %930 = vmatpush2.msra.mxu0 0.0
    %931 = vmatprep.subr.mxu0 0.0
    %932 = vmatpush2.msra.mxu0 0.0
    %933 = vmatprep.subr.mxu0 0.0
    %934 = vmatpush2.msra.mxu0 0.0
    %935 = vmatprep.subr.mxu0 0.0
    %936 = vmatpush2.msra.mxu0 0.0
    %937 = vmatprep.subr.mxu0 0.0
    %938 = vmatpush2.msra.mxu0 0.0
    %939 = vmatprep.subr.mxu0 0.0
    %940 = vmatpush2.msra.mxu0 0.0
    %941 = vmatprep.subr.mxu0 0.0
    %942 = vmatpush2.msra.mxu0 0.0
    %943 = vmatprep.subr.mxu0 0.0
    %944 = vmatpush2.msra.mxu0 0.0
    %945 = vmatprep.subr.mxu0 0.0
    %946 = vmatpush2.msra.mxu0 0.0
    %947 = vmatprep.subr.mxu0 0.0
    %948 = vmatpush2.msra.mxu0 0.0
    %949 = vmatprep.mubr.f32.mxu0 0.0
    %950 = vmatmul.mubr.f32.gmra.mxu0 %v883
    %v951 = vpop.f32.mrf.mxu0
    %v952 = vadd.f32 0.0, %v951
    %v953 = vpop.f32.mrf.mxu0
    %954 = vdwg.mxu0
    %956 = vrot.lane.b32.xlu0 %v368, 120
    %v957 = vpop.permute.xlu0 %956
    %v960 = vsel %vm377, %v877, 0
    %962 = vmatprep.subr.mxu0 0.0
    %963 = vmatpush1.msra.mxu0 0.0
    %964 = vmatprep.subr.mxu0 0.0
    %965 = vmatpush1.msra.mxu0 0.0
    %966 = vmatprep.subr.mxu0 0.0
    %967 = vmatpush1.msra.mxu0 0.0
    %968 = vmatprep.subr.mxu0 0.0
    %969 = vmatpush1.msra.mxu0 0.0
    %970 = vmatprep.subr.mxu0 0.0
    %971 = vmatpush1.msra.mxu0 0.0
    %972 = vmatprep.subr.mxu0 0.0
    %973 = vmatpush1.msra.mxu0 0.0
    %974 = vmatprep.subr.mxu0 0.0
    %975 = vmatpush1.msra.mxu0 0.0
    %976 = vmatprep.subr.mxu0 0.0
    %977 = vmatpush1.msra.mxu0 0.0
    %978 = vmatprep.subr.mxu0 0.0
    %979 = vmatpush1.msra.mxu0 0.0
    %980 = vmatprep.subr.mxu0 0.0
    %981 = vmatpush1.msra.mxu0 0.0
    %982 = vmatprep.subr.mxu0 0.0
    %983 = vmatpush1.msra.mxu0 0.0
    %984 = vmatprep.subr.mxu0 0.0
    %985 = vmatpush1.msra.mxu0 0.0
    %986 = vmatprep.subr.mxu0 0.0
    %987 = vmatpush1.msra.mxu0 0.0
    %988 = vmatprep.subr.mxu0 0.0
    %989 = vmatpush1.msra.mxu0 0.0
    %990 = vmatprep.subr.mxu0 0.0
    %991 = vmatpush1.msra.mxu0 0.0
    %992 = vmatprep.subr.mxu0 0.0
    %993 = vmatpush1.msra.mxu0 %v957
    %994 = vmatprep.subr.mxu0 0.0
    %995 = vmatpush2.msra.mxu0 0.0
    %996 = vmatprep.subr.mxu0 0.0
    %997 = vmatpush2.msra.mxu0 0.0
    %998 = vmatprep.subr.mxu0 0.0
    %999 = vmatpush2.msra.mxu0 0.0
    %1000 = vmatprep.subr.mxu0 0.0
    %1001 = vmatpush2.msra.mxu0 0.0
    %1002 = vmatprep.subr.mxu0 0.0
    %1003 = vmatpush2.msra.mxu0 0.0
    %1004 = vmatprep.subr.mxu0 0.0
    %1005 = vmatpush2.msra.mxu0 0.0
    %1006 = vmatprep.subr.mxu0 0.0
    %1007 = vmatpush2.msra.mxu0 0.0
    %1008 = vmatprep.subr.mxu0 0.0
    %1009 = vmatpush2.msra.mxu0 0.0
    %1010 = vmatprep.subr.mxu0 0.0
    %1011 = vmatpush2.msra.mxu0 0.0
    %1012 = vmatprep.subr.mxu0 0.0
    %1013 = vmatpush2.msra.mxu0 0.0
    %1014 = vmatprep.subr.mxu0 0.0
    %1015 = vmatpush2.msra.mxu0 0.0
    %1016 = vmatprep.subr.mxu0 0.0
    %1017 = vmatpush2.msra.mxu0 0.0
    %1018 = vmatprep.subr.mxu0 0.0
    %1019 = vmatpush2.msra.mxu0 0.0
    %1020 = vmatprep.subr.mxu0 0.0
    %1021 = vmatpush2.msra.mxu0 0.0
    %1022 = vmatprep.subr.mxu0 0.0
    %1023 = vmatpush2.msra.mxu0 0.0
    %1024 = vmatprep.subr.mxu0 0.0
    %1025 = vmatpush2.msra.mxu0 0.0
    %1026 = vmatprep.mubr.f32.mxu0 0.0
    %1027 = vmatmul.mubr.f32.gmra.mxu0 %v960
    %v1028 = vpop.f32.mrf.mxu0
    %v1029 = vadd.f32 0.0, %v1028
    %v1030 = vpop.f32.mrf.mxu0
    %1031 = vdwg.mxu0
    %1034 = vrot.lane.b32.xlu0 %v952, 8
    %v1035 = vpop.permute.xlu0 %1034
    %1036 = vrot.lane.b32.xlu0 %v1029, 8
    %v1037 = vpop.permute.xlu0 %1036
    %vm1040 = vcmask 130112
    %1041 = vst.msk [vmem:[#allocation2] sm:$0xff] %vm1040, %v1035
    %1042 = vst.msk [vmem:[#allocation2 + $0x8] sm:$0xff] %vm1040, %v1037
    %1043 = vrot.lane.b32.xlu0 %v189, 112
    %v1044 = vpop.permute.xlu0 %1043
    %1045 = vrot.lane.b32.xlu0 %v273, 112
    %v1046 = vpop.permute.xlu0 %1045
    %v1047 = vsel %vm377, %v1044, 0
    %v1049 = vsel %vm377, %v1046, 0
    %1051 = vmatprep.subr.mxu0 0.0
    %1052 = vmatpush1.xpose.msra.mxu0 0.0
    %1053 = vmatprep.subr.mxu0 0.0
    %1054 = vmatpush1.xpose.msra.mxu0 0.0
    %1055 = vmatprep.subr.mxu0 0.0
    %1056 = vmatpush1.xpose.msra.mxu0 0.0
    %1057 = vmatprep.subr.mxu0 0.0
    %1058 = vmatpush1.xpose.msra.mxu0 0.0
    %1059 = vmatprep.subr.mxu0 0.0
    %1060 = vmatpush1.xpose.msra.mxu0 0.0
    %1061 = vmatprep.subr.mxu0 0.0
    %1062 = vmatpush1.xpose.msra.mxu0 0.0
    %1063 = vmatprep.subr.mxu0 0.0
    %1064 = vmatpush1.xpose.msra.mxu0 0.0
    %1065 = vmatprep.subr.mxu0 0.0
    %1066 = vmatpush1.xpose.msra.mxu0 0.0
    %1067 = vmatprep.subr.mxu0 0.0
    %1068 = vmatpush1.xpose.msra.mxu0 0.0
    %1069 = vmatprep.subr.mxu0 0.0
    %1070 = vmatpush1.xpose.msra.mxu0 0.0
    %1071 = vmatprep.subr.mxu0 0.0
    %1072 = vmatpush1.xpose.msra.mxu0 0.0
    %1073 = vmatprep.subr.mxu0 0.0
    %1074 = vmatpush1.xpose.msra.mxu0 0.0
    %1075 = vmatprep.subr.mxu0 0.0
    %1076 = vmatpush1.xpose.msra.mxu0 0.0
    %1077 = vmatprep.subr.mxu0 0.0
    %1078 = vmatpush1.xpose.msra.mxu0 0.0
    %1079 = vmatprep.subr.mxu0 0.0
    %1080 = vmatpush1.xpose.msra.mxu0 0.0
    %1081 = vmatprep.subr.mxu0 0.0
    %1082 = vmatpush1.xpose.msra.mxu0 %v1049
    %1083 = vmatprep.subr.mxu0 0.0
    %1084 = vmatpush2.xpose.msra.mxu0 0.0
    %1085 = vmatprep.subr.mxu0 0.0
    %1086 = vmatpush2.xpose.msra.mxu0 0.0
    %1087 = vmatprep.subr.mxu0 0.0
    %1088 = vmatpush2.xpose.msra.mxu0 0.0
    %1089 = vmatprep.subr.mxu0 0.0
    %1090 = vmatpush2.xpose.msra.mxu0 0.0
    %1091 = vmatprep.subr.mxu0 0.0
    %1092 = vmatpush2.xpose.msra.mxu0 0.0
    %1093 = vmatprep.subr.mxu0 0.0
    %1094 = vmatpush2.xpose.msra.mxu0 0.0
    %1095 = vmatprep.subr.mxu0 0.0
    %1096 = vmatpush2.xpose.msra.mxu0 0.0
    %1097 = vmatprep.subr.mxu0 0.0
    %1098 = vmatpush2.xpose.msra.mxu0 0.0
    %1099 = vmatprep.subr.mxu0 0.0
    %1100 = vmatpush2.xpose.msra.mxu0 0.0
    %1101 = vmatprep.subr.mxu0 0.0
    %1102 = vmatpush2.xpose.msra.mxu0 0.0
    %1103 = vmatprep.subr.mxu0 0.0
    %1104 = vmatpush2.xpose.msra.mxu0 0.0
    %1105 = vmatprep.subr.mxu0 0.0
    %1106 = vmatpush2.xpose.msra.mxu0 0.0
    %1107 = vmatprep.subr.mxu0 0.0
    %1108 = vmatpush2.xpose.msra.mxu0 0.0
    %1109 = vmatprep.subr.mxu0 0.0
    %1110 = vmatpush2.xpose.msra.mxu0 0.0
    %1111 = vmatprep.subr.mxu0 0.0
    %1112 = vmatpush2.xpose.msra.mxu0 0.0
    %1113 = vmatprep.subr.mxu0 0.0
    %1114 = vmatpush2.xpose.msra.mxu0 0.0
    %1115 = vmatprep.mubr.f32.mxu0 0.0
    %1116 = vmatmul.mubr.f32.gmra.mxu0 %v1047
    %v1117 = vpop.f32.mrf.mxu0
    %v1118 = vadd.f32 %v375, %v1117
    %v1119 = vpop.f32.mrf.mxu0
    %1120 = vdwg.mxu0
    %1121 = vrot.lane.b32.xlu0 %v190, 112
    %v1122 = vpop.permute.xlu0 %1121
    %1123 = vrot.lane.b32.xlu0 %v278, 112
    %v1124 = vpop.permute.xlu0 %1123
    %v1125 = vsel %vm377, %v1122, 0
    %v1127 = vsel %vm377, %v1124, 0
    %1129 = vmatprep.subr.mxu0 0.0
    %1130 = vmatpush1.xpose.msra.mxu0 0.0
    %1131 = vmatprep.subr.mxu0 0.0
    %1132 = vmatpush1.xpose.msra.mxu0 0.0
    %1133 = vmatprep.subr.mxu0 0.0
    %1134 = vmatpush1.xpose.msra.mxu0 0.0
    %1135 = vmatprep.subr.mxu0 0.0
    %1136 = vmatpush1.xpose.msra.mxu0 0.0
    %1137 = vmatprep.subr.mxu0 0.0
    %1138 = vmatpush1.xpose.msra.mxu0 0.0
    %1139 = vmatprep.subr.mxu0 0.0
    %1140 = vmatpush1.xpose.msra.mxu0 0.0
    %1141 = vmatprep.subr.mxu0 0.0
    %1142 = vmatpush1.xpose.msra.mxu0 0.0
    %1143 = vmatprep.subr.mxu0 0.0
    %1144 = vmatpush1.xpose.msra.mxu0 0.0
    %1145 = vmatprep.subr.mxu0 0.0
    %1146 = vmatpush1.xpose.msra.mxu0 0.0
    %1147 = vmatprep.subr.mxu0 0.0
    %1148 = vmatpush1.xpose.msra.mxu0 0.0
    %1149 = vmatprep.subr.mxu0 0.0
    %1150 = vmatpush1.xpose.msra.mxu0 0.0
    %1151 = vmatprep.subr.mxu0 0.0
    %1152 = vmatpush1.xpose.msra.mxu0 0.0
    %1153 = vmatprep.subr.mxu0 0.0
    %1154 = vmatpush1.xpose.msra.mxu0 0.0
    %1155 = vmatprep.subr.mxu0 0.0
    %1156 = vmatpush1.xpose.msra.mxu0 0.0
    %1157 = vmatprep.subr.mxu0 0.0
    %1158 = vmatpush1.xpose.msra.mxu0 0.0
    %1159 = vmatprep.subr.mxu0 0.0
    %1160 = vmatpush1.xpose.msra.mxu0 %v1127
    %1161 = vmatprep.subr.mxu0 0.0
    %1162 = vmatpush2.xpose.msra.mxu0 0.0
    %1163 = vmatprep.subr.mxu0 0.0
    %1164 = vmatpush2.xpose.msra.mxu0 0.0
    %1165 = vmatprep.subr.mxu0 0.0
    %1166 = vmatpush2.xpose.msra.mxu0 0.0
    %1167 = vmatprep.subr.mxu0 0.0
    %1168 = vmatpush2.xpose.msra.mxu0 0.0
    %1169 = vmatprep.subr.mxu0 0.0
    %1170 = vmatpush2.xpose.msra.mxu0 0.0
    %1171 = vmatprep.subr.mxu0 0.0
    %1172 = vmatpush2.xpose.msra.mxu0 0.0
    %1173 = vmatprep.subr.mxu0 0.0
    %1174 = vmatpush2.xpose.msra.mxu0 0.0
    %1175 = vmatprep.subr.mxu0 0.0
    %1176 = vmatpush2.xpose.msra.mxu0 0.0
    %1177 = vmatprep.subr.mxu0 0.0
    %1178 = vmatpush2.xpose.msra.mxu0 0.0
    %1179 = vmatprep.subr.mxu0 0.0
    %1180 = vmatpush2.xpose.msra.mxu0 0.0
    %1181 = vmatprep.subr.mxu0 0.0
    %1182 = vmatpush2.xpose.msra.mxu0 0.0
    %1183 = vmatprep.subr.mxu0 0.0
    %1184 = vmatpush2.xpose.msra.mxu0 0.0
    %1185 = vmatprep.subr.mxu0 0.0
    %1186 = vmatpush2.xpose.msra.mxu0 0.0
    %1187 = vmatprep.subr.mxu0 0.0
    %1188 = vmatpush2.xpose.msra.mxu0 0.0
    %1189 = vmatprep.subr.mxu0 0.0
    %1190 = vmatpush2.xpose.msra.mxu0 0.0
    %1191 = vmatprep.subr.mxu0 0.0
    %1192 = vmatpush2.xpose.msra.mxu0 0.0
    %1193 = vmatprep.mubr.f32.mxu0 0.0
    %1194 = vmatmul.mubr.f32.gmra.mxu0 %v1125
    %v1195 = vpop.f32.mrf.mxu0
    %v1196 = vadd.f32 %v376, %v1195
    %v1197 = vpop.f32.mrf.mxu0
    %1198 = vdwg.mxu0
    %v1199 = vsel %vm377, %v1118, -inf
    %1200 = vmax.xlane.f32.xlu0 %v1199
    %v1201 = vpop.xlane.xlu0 %1200
    %v1202 = vsel %vm377, %v1196, -inf
    %1203 = vmax.xlane.f32.xlu0 %v1202
    %v1204 = vpop.xlane.xlu0 %1203
    %v1205 = vsub.f32 %v1118, %v1201
    %v1206 = vsub.f32 %v1196, %v1204
    %v1207 = vmul.f32 %v1205, 1.442695
    %v1208 = vpow.pop %v1207
    %v1209 = vmul.f32 %v1206, 1.442695
    %v1210 = vpow.pop %v1209
    %v1211 = vsel %vm377, %v1208, 0.0
    %1212 = vadd.xlane.f32.xlu0 %v1211
    %v1213 = vpop.xlane.xlu0 %1212
    %v1214 = vsel %vm377, %v1210, 0.0
    %1215 = vadd.xlane.f32.xlu0 %v1214
    %v1216 = vpop.xlane.xlu0 %1215
    %v1217 = vrcp.pop %v1213
    %v1218 = vrcp.pop %v1216
    %v1219 = vmul.f32 %v1208, %v1217
    %v1220 = vmul.f32 %v1210, %v1218
    %1221 = vrot.lane.b32.xlu0 %v363, 112
    %v1222 = vpop.permute.xlu0 %1221
    %v1225 = vsel %vm377, %v1219, 0
    %1227 = vmatprep.subr.mxu0 0.0
    %1228 = vmatpush1.msra.mxu0 0.0
    %1229 = vmatprep.subr.mxu0 0.0
    %1230 = vmatpush1.msra.mxu0 0.0
    %1231 = vmatprep.subr.mxu0 0.0
    %1232 = vmatpush1.msra.mxu0 0.0
    %1233 = vmatprep.subr.mxu0 0.0
    %1234 = vmatpush1.msra.mxu0 0.0
    %1235 = vmatprep.subr.mxu0 0.0
    %1236 = vmatpush1.msra.mxu0 0.0
    %1237 = vmatprep.subr.mxu0 0.0
    %1238 = vmatpush1.msra.mxu0 0.0
    %1239 = vmatprep.subr.mxu0 0.0
    %1240 = vmatpush1.msra.mxu0 0.0
    %1241 = vmatprep.subr.mxu0 0.0
    %1242 = vmatpush1.msra.mxu0 0.0
    %1243 = vmatprep.subr.mxu0 0.0
    %1244 = vmatpush1.msra.mxu0 0.0
    %1245 = vmatprep.subr.mxu0 0.0
    %1246 = vmatpush1.msra.mxu0 0.0
    %1247 = vmatprep.subr.mxu0 0.0
    %1248 = vmatpush1.msra.mxu0 0.0
    %1249 = vmatprep.subr.mxu0 0.0
    %1250 = vmatpush1.msra.mxu0 0.0
    %1251 = vmatprep.subr.mxu0 0.0
    %1252 = vmatpush1.msra.mxu0 0.0
    %1253 = vmatprep.subr.mxu0 0.0
    %1254 = vmatpush1.msra.mxu0 0.0
    %1255 = vmatprep.subr.mxu0 0.0
    %1256 = vmatpush1.msra.mxu0 0.0
    %1257 = vmatprep.subr.mxu0 0.0
    %1258 = vmatpush1.msra.mxu0 %v1222
    %1259 = vmatprep.subr.mxu0 0.0
    %1260 = vmatpush2.msra.mxu0 0.0
    %1261 = vmatprep.subr.mxu0 0.0
    %1262 = vmatpush2.msra.mxu0 0.0
    %1263 = vmatprep.subr.mxu0 0.0
    %1264 = vmatpush2.msra.mxu0 0.0
    %1265 = vmatprep.subr.mxu0 0.0
    %1266 = vmatpush2.msra.mxu0 0.0
    %1267 = vmatprep.subr.mxu0 0.0
    %1268 = vmatpush2.msra.mxu0 0.0
    %1269 = vmatprep.subr.mxu0 0.0
    %1270 = vmatpush2.msra.mxu0 0.0
    %1271 = vmatprep.subr.mxu0 0.0
    %1272 = vmatpush2.msra.mxu0 0.0
    %1273 = vmatprep.subr.mxu0 0.0
    %1274 = vmatpush2.msra.mxu0 0.0
    %1275 = vmatprep.subr.mxu0 0.0
    %1276 = vmatpush2.msra.mxu0 0.0
    %1277 = vmatprep.subr.mxu0 0.0
    %1278 = vmatpush2.msra.mxu0 0.0
    %1279 = vmatprep.subr.mxu0 0.0
    %1280 = vmatpush2.msra.mxu0 0.0
    %1281 = vmatprep.subr.mxu0 0.0
    %1282 = vmatpush2.msra.mxu0 0.0
    %1283 = vmatprep.subr.mxu0 0.0
    %1284 = vmatpush2.msra.mxu0 0.0
    %1285 = vmatprep.subr.mxu0 0.0
    %1286 = vmatpush2.msra.mxu0 0.0
    %1287 = vmatprep.subr.mxu0 0.0
    %1288 = vmatpush2.msra.mxu0 0.0
    %1289 = vmatprep.subr.mxu0 0.0
    %1290 = vmatpush2.msra.mxu0 0.0
    %1291 = vmatprep.mubr.f32.mxu0 0.0
    %1292 = vmatmul.mubr.f32.gmra.mxu0 %v1225
    %v1293 = vpop.f32.mrf.mxu0
    %v1294 = vadd.f32 0.0, %v1293
    %v1295 = vpop.f32.mrf.mxu0
    %1296 = vdwg.mxu0
    %1297 = vrot.lane.b32.xlu0 %v368, 112
    %v1298 = vpop.permute.xlu0 %1297
    %v1301 = vsel %vm377, %v1220, 0
    %1303 = vmatprep.subr.mxu0 0.0
    %1304 = vmatpush1.msra.mxu0 0.0
    %1305 = vmatprep.subr.mxu0 0.0
    %1306 = vmatpush1.msra.mxu0 0.0
    %1307 = vmatprep.subr.mxu0 0.0
    %1308 = vmatpush1.msra.mxu0 0.0
    %1309 = vmatprep.subr.mxu0 0.0
    %1310 = vmatpush1.msra.mxu0 0.0
    %1311 = vmatprep.subr.mxu0 0.0
    %1312 = vmatpush1.msra.mxu0 0.0
    %1313 = vmatprep.subr.mxu0 0.0
    %1314 = vmatpush1.msra.mxu0 0.0
    %1315 = vmatprep.subr.mxu0 0.0
    %1316 = vmatpush1.msra.mxu0 0.0
    %1317 = vmatprep.subr.mxu0 0.0
    %1318 = vmatpush1.msra.mxu0 0.0
    %1319 = vmatprep.subr.mxu0 0.0
    %1320 = vmatpush1.msra.mxu0 0.0
    %1321 = vmatprep.subr.mxu0 0.0
    %1322 = vmatpush1.msra.mxu0 0.0
    %1323 = vmatprep.subr.mxu0 0.0
    %1324 = vmatpush1.msra.mxu0 0.0
    %1325 = vmatprep.subr.mxu0 0.0
    %1326 = vmatpush1.msra.mxu0 0.0
    %1327 = vmatprep.subr.mxu0 0.0
    %1328 = vmatpush1.msra.mxu0 0.0
    %1329 = vmatprep.subr.mxu0 0.0
    %1330 = vmatpush1.msra.mxu0 0.0
    %1331 = vmatprep.subr.mxu0 0.0
    %1332 = vmatpush1.msra.mxu0 0.0
    %1333 = vmatprep.subr.mxu0 0.0
    %1334 = vmatpush1.msra.mxu0 %v1298
    %1335 = vmatprep.subr.mxu0 0.0
    %1336 = vmatpush2.msra.mxu0 0.0
    %1337 = vmatprep.subr.mxu0 0.0
    %1338 = vmatpush2.msra.mxu0 0.0
    %1339 = vmatprep.subr.mxu0 0.0
    %1340 = vmatpush2.msra.mxu0 0.0
    %1341 = vmatprep.subr.mxu0 0.0
    %1342 = vmatpush2.msra.mxu0 0.0
    %1343 = vmatprep.subr.mxu0 0.0
    %1344 = vmatpush2.msra.mxu0 0.0
    %1345 = vmatprep.subr.mxu0 0.0
    %1346 = vmatpush2.msra.mxu0 0.0
    %1347 = vmatprep.subr.mxu0 0.0
    %1348 = vmatpush2.msra.mxu0 0.0
    %1349 = vmatprep.subr.mxu0 0.0
    %1350 = vmatpush2.msra.mxu0 0.0
    %1351 = vmatprep.subr.mxu0 0.0
    %1352 = vmatpush2.msra.mxu0 0.0
    %1353 = vmatprep.subr.mxu0 0.0
    %1354 = vmatpush2.msra.mxu0 0.0
    %1355 = vmatprep.subr.mxu0 0.0
    %1356 = vmatpush2.msra.mxu0 0.0
    %1357 = vmatprep.subr.mxu0 0.0
    %1358 = vmatpush2.msra.mxu0 0.0
    %1359 = vmatprep.subr.mxu0 0.0
    %1360 = vmatpush2.msra.mxu0 0.0
    %1361 = vmatprep.subr.mxu0 0.0
    %1362 = vmatpush2.msra.mxu0 0.0
    %1363 = vmatprep.subr.mxu0 0.0
    %1364 = vmatpush2.msra.mxu0 0.0
    %1365 = vmatprep.subr.mxu0 0.0
    %1366 = vmatpush2.msra.mxu0 0.0
    %1367 = vmatprep.mubr.f32.mxu0 0.0
    %1368 = vmatmul.mubr.f32.gmra.mxu0 %v1301
    %v1369 = vpop.f32.mrf.mxu0
    %v1370 = vadd.f32 0.0, %v1369
    %v1371 = vpop.f32.mrf.mxu0
    %1372 = vdwg.mxu0
    %1375 = vrot.lane.b32.xlu0 %v1294, 16
    %v1376 = vpop.permute.xlu0 %1375
    %1377 = vrot.lane.b32.xlu0 %v1370, 16
    %v1378 = vpop.permute.xlu0 %1377
    %vm1381 = vcmask 195712
    %1382 = vst.msk [vmem:[#allocation2] sm:$0xff] %vm1381, %v1376
    %1383 = vst.msk [vmem:[#allocation2 + $0x8] sm:$0xff] %vm1381, %v1378
    %1384 = vrot.lane.b32.xlu0 %v189, 104
    %v1385 = vpop.permute.xlu0 %1384
    %1386 = vrot.lane.b32.xlu0 %v273, 104
    %v1387 = vpop.permute.xlu0 %1386
    %v1388 = vsel %vm377, %v1385, 0
    %v1390 = vsel %vm377, %v1387, 0
    %1392 = vmatprep.subr.mxu0 0.0
    %1393 = vmatpush1.xpose.msra.mxu0 0.0
    %1394 = vmatprep.subr.mxu0 0.0
    %1395 = vmatpush1.xpose.msra.mxu0 0.0
    %1396 = vmatprep.subr.mxu0 0.0
    %1397 = vmatpush1.xpose.msra.mxu0 0.0
    %1398 = vmatprep.subr.mxu0 0.0
    %1399 = vmatpush1.xpose.msra.mxu0 0.0
    %1400 = vmatprep.subr.mxu0 0.0
    %1401 = vmatpush1.xpose.msra.mxu0 0.0
    %1402 = vmatprep.subr.mxu0 0.0
    %1403 = vmatpush1.xpose.msra.mxu0 0.0
    %1404 = vmatprep.subr.mxu0 0.0
    %1405 = vmatpush1.xpose.msra.mxu0 0.0
    %1406 = vmatprep.subr.mxu0 0.0
    %1407 = vmatpush1.xpose.msra.mxu0 0.0
    %1408 = vmatprep.subr.mxu0 0.0
    %1409 = vmatpush1.xpose.msra.mxu0 0.0
    %1410 = vmatprep.subr.mxu0 0.0
    %1411 = vmatpush1.xpose.msra.mxu0 0.0
    %1412 = vmatprep.subr.mxu0 0.0
    %1413 = vmatpush1.xpose.msra.mxu0 0.0
    %1414 = vmatprep.subr.mxu0 0.0
    %1415 = vmatpush1.xpose.msra.mxu0 0.0
    %1416 = vmatprep.subr.mxu0 0.0
    %1417 = vmatpush1.xpose.msra.mxu0 0.0
    %1418 = vmatprep.subr.mxu0 0.0
    %1419 = vmatpush1.xpose.msra.mxu0 0.0
    %1420 = vmatprep.subr.mxu0 0.0
    %1421 = vmatpush1.xpose.msra.mxu0 0.0
    %1422 = vmatprep.subr.mxu0 0.0
    %1423 = vmatpush1.xpose.msra.mxu0 %v1390
    %1424 = vmatprep.subr.mxu0 0.0
    %1425 = vmatpush2.xpose.msra.mxu0 0.0
    %1426 = vmatprep.subr.mxu0 0.0
    %1427 = vmatpush2.xpose.msra.mxu0 0.0
    %1428 = vmatprep.subr.mxu0 0.0
    %1429 = vmatpush2.xpose.msra.mxu0 0.0
    %1430 = vmatprep.subr.mxu0 0.0
    %1431 = vmatpush2.xpose.msra.mxu0 0.0
    %1432 = vmatprep.subr.mxu0 0.0
    %1433 = vmatpush2.xpose.msra.mxu0 0.0
    %1434 = vmatprep.subr.mxu0 0.0
    %1435 = vmatpush2.xpose.msra.mxu0 0.0
    %1436 = vmatprep.subr.mxu0 0.0
    %1437 = vmatpush2.xpose.msra.mxu0 0.0
    %1438 = vmatprep.subr.mxu0 0.0
    %1439 = vmatpush2.xpose.msra.mxu0 0.0
    %1440 = vmatprep.subr.mxu0 0.0
    %1441 = vmatpush2.xpose.msra.mxu0 0.0
    %1442 = vmatprep.subr.mxu0 0.0
    %1443 = vmatpush2.xpose.msra.mxu0 0.0
    %1444 = vmatprep.subr.mxu0 0.0
    %1445 = vmatpush2.xpose.msra.mxu0 0.0
    %1446 = vmatprep.subr.mxu0 0.0
    %1447 = vmatpush2.xpose.msra.mxu0 0.0
    %1448 = vmatprep.subr.mxu0 0.0
    %1449 = vmatpush2.xpose.msra.mxu0 0.0
    %1450 = vmatprep.subr.mxu0 0.0
    %1451 = vmatpush2.xpose.msra.mxu0 0.0
    %1452 = vmatprep.subr.mxu0 0.0
    %1453 = vmatpush2.xpose.msra.mxu0 0.0
    %1454 = vmatprep.subr.mxu0 0.0
    %1455 = vmatpush2.xpose.msra.mxu0 0.0
    %1456 = vmatprep.mubr.f32.mxu0 0.0
    %1457 = vmatmul.mubr.f32.gmra.mxu0 %v1388
    %v1458 = vpop.f32.mrf.mxu0
    %v1459 = vadd.f32 %v375, %v1458
    %v1460 = vpop.f32.mrf.mxu0
    %1461 = vdwg.mxu0
    %1462 = vrot.lane.b32.xlu0 %v190, 104
    %v1463 = vpop.permute.xlu0 %1462
    %1464 = vrot.lane.b32.xlu0 %v278, 104
    %v1465 = vpop.permute.xlu0 %1464
    %v1466 = vsel %vm377, %v1463, 0
    %v1468 = vsel %vm377, %v1465, 0
    %1470 = vmatprep.subr.mxu0 0.0
    %1471 = vmatpush1.xpose.msra.mxu0 0.0
    %1472 = vmatprep.subr.mxu0 0.0
    %1473 = vmatpush1.xpose.msra.mxu0 0.0
    %1474 = vmatprep.subr.mxu0 0.0
    %1475 = vmatpush1.xpose.msra.mxu0 0.0
    %1476 = vmatprep.subr.mxu0 0.0
    %1477 = vmatpush1.xpose.msra.mxu0 0.0
    %1478 = vmatprep.subr.mxu0 0.0
    %1479 = vmatpush1.xpose.msra.mxu0 0.0
    %1480 = vmatprep.subr.mxu0 0.0
    %1481 = vmatpush1.xpose.msra.mxu0 0.0
    %1482 = vmatprep.subr.mxu0 0.0
    %1483 = vmatpush1.xpose.msra.mxu0 0.0
    %1484 = vmatprep.subr.mxu0 0.0
    %1485 = vmatpush1.xpose.msra.mxu0 0.0
    %1486 = vmatprep.subr.mxu0 0.0
    %1487 = vmatpush1.xpose.msra.mxu0 0.0
    %1488 = vmatprep.subr.mxu0 0.0
    %1489 = vmatpush1.xpose.msra.mxu0 0.0
    %1490 = vmatprep.subr.mxu0 0.0
    %1491 = vmatpush1.xpose.msra.mxu0 0.0
    %1492 = vmatprep.subr.mxu0 0.0
    %1493 = vmatpush1.xpose.msra.mxu0 0.0
    %1494 = vmatprep.subr.mxu0 0.0
    %1495 = vmatpush1.xpose.msra.mxu0 0.0
    %1496 = vmatprep.subr.mxu0 0.0
    %1497 = vmatpush1.xpose.msra.mxu0 0.0
    %1498 = vmatprep.subr.mxu0 0.0
    %1499 = vmatpush1.xpose.msra.mxu0 0.0
    %1500 = vmatprep.subr.mxu0 0.0
    %1501 = vmatpush1.xpose.msra.mxu0 %v1468
    %1502 = vmatprep.subr.mxu0 0.0
    %1503 = vmatpush2.xpose.msra.mxu0 0.0
    %1504 = vmatprep.subr.mxu0 0.0
    %1505 = vmatpush2.xpose.msra.mxu0 0.0
    %1506 = vmatprep.subr.mxu0 0.0
    %1507 = vmatpush2.xpose.msra.mxu0 0.0
    %1508 = vmatprep.subr.mxu0 0.0
    %1509 = vmatpush2.xpose.msra.mxu0 0.0
    %1510 = vmatprep.subr.mxu0 0.0
    %1511 = vmatpush2.xpose.msra.mxu0 0.0
    %1512 = vmatprep.subr.mxu0 0.0
    %1513 = vmatpush2.xpose.msra.mxu0 0.0
    %1514 = vmatprep.subr.mxu0 0.0
    %1515 = vmatpush2.xpose.msra.mxu0 0.0
    %1516 = vmatprep.subr.mxu0 0.0
    %1517 = vmatpush2.xpose.msra.mxu0 0.0
    %1518 = vmatprep.subr.mxu0 0.0
    %1519 = vmatpush2.xpose.msra.mxu0 0.0
    %1520 = vmatprep.subr.mxu0 0.0
    %1521 = vmatpush2.xpose.msra.mxu0 0.0
    %1522 = vmatprep.subr.mxu0 0.0
    %1523 = vmatpush2.xpose.msra.mxu0 0.0
    %1524 = vmatprep.subr.mxu0 0.0
    %1525 = vmatpush2.xpose.msra.mxu0 0.0
    %1526 = vmatprep.subr.mxu0 0.0
    %1527 = vmatpush2.xpose.msra.mxu0 0.0
    %1528 = vmatprep.subr.mxu0 0.0
    %1529 = vmatpush2.xpose.msra.mxu0 0.0
    %1530 = vmatprep.subr.mxu0 0.0
    %1531 = vmatpush2.xpose.msra.mxu0 0.0
    %1532 = vmatprep.subr.mxu0 0.0
    %1533 = vmatpush2.xpose.msra.mxu0 0.0
    %1534 = vmatprep.mubr.f32.mxu0 0.0
    %1535 = vmatmul.mubr.f32.gmra.mxu0 %v1466
    %v1536 = vpop.f32.mrf.mxu0
    %v1537 = vadd.f32 %v376, %v1536
    %v1538 = vpop.f32.mrf.mxu0
    %1539 = vdwg.mxu0
    %v1540 = vsel %vm377, %v1459, -inf
    %1541 = vmax.xlane.f32.xlu0 %v1540
    %v1542 = vpop.xlane.xlu0 %1541
    %v1543 = vsel %vm377, %v1537, -inf
    %1544 = vmax.xlane.f32.xlu0 %v1543
    %v1545 = vpop.xlane.xlu0 %1544
    %v1546 = vsub.f32 %v1459, %v1542
    %v1547 = vsub.f32 %v1537, %v1545
    %v1548 = vmul.f32 %v1546, 1.442695
    %v1549 = vpow.pop %v1548
    %v1550 = vmul.f32 %v1547, 1.442695
    %v1551 = vpow.pop %v1550
    %v1552 = vsel %vm377, %v1549, 0.0
    %1553 = vadd.xlane.f32.xlu0 %v1552
    %v1554 = vpop.xlane.xlu0 %1553
    %v1555 = vsel %vm377, %v1551, 0.0
    %1556 = vadd.xlane.f32.xlu0 %v1555
    %v1557 = vpop.xlane.xlu0 %1556
    %v1558 = vrcp.pop %v1554
    %v1559 = vrcp.pop %v1557
    %v1560 = vmul.f32 %v1549, %v1558
    %v1561 = vmul.f32 %v1551, %v1559
    %1562 = vrot.lane.b32.xlu0 %v363, 104
    %v1563 = vpop.permute.xlu0 %1562
    %v1566 = vsel %vm377, %v1560, 0
    %1568 = vmatprep.subr.mxu0 0.0
    %1569 = vmatpush1.msra.mxu0 0.0
    %1570 = vmatprep.subr.mxu0 0.0
    %1571 = vmatpush1.msra.mxu0 0.0
    %1572 = vmatprep.subr.mxu0 0.0
    %1573 = vmatpush1.msra.mxu0 0.0
    %1574 = vmatprep.subr.mxu0 0.0
    %1575 = vmatpush1.msra.mxu0 0.0
    %1576 = vmatprep.subr.mxu0 0.0
    %1577 = vmatpush1.msra.mxu0 0.0
    %1578 = vmatprep.subr.mxu0 0.0
    %1579 = vmatpush1.msra.mxu0 0.0
    %1580 = vmatprep.subr.mxu0 0.0
    %1581 = vmatpush1.msra.mxu0 0.0
    %1582 = vmatprep.subr.mxu0 0.0
    %1583 = vmatpush1.msra.mxu0 0.0
    %1584 = vmatprep.subr.mxu0 0.0
    %1585 = vmatpush1.msra.mxu0 0.0
    %1586 = vmatprep.subr.mxu0 0.0
    %1587 = vmatpush1.msra.mxu0 0.0
    %1588 = vmatprep.subr.mxu0 0.0
    %1589 = vmatpush1.msra.mxu0 0.0
    %1590 = vmatprep.subr.mxu0 0.0
    %1591 = vmatpush1.msra.mxu0 0.0
    %1592 = vmatprep.subr.mxu0 0.0
    %1593 = vmatpush1.msra.mxu0 0.0
    %1594 = vmatprep.subr.mxu0 0.0
    %1595 = vmatpush1.msra.mxu0 0.0
    %1596 = vmatprep.subr.mxu0 0.0
    %1597 = vmatpush1.msra.mxu0 0.0
    %1598 = vmatprep.subr.mxu0 0.0
    %1599 = vmatpush1.msra.mxu0 %v1563
    %1600 = vmatprep.subr.mxu0 0.0
    %1601 = vmatpush2.msra.mxu0 0.0
    %1602 = vmatprep.subr.mxu0 0.0
    %1603 = vmatpush2.msra.mxu0 0.0
    %1604 = vmatprep.subr.mxu0 0.0
    %1605 = vmatpush2.msra.mxu0 0.0
    %1606 = vmatprep.subr.mxu0 0.0
    %1607 = vmatpush2.msra.mxu0 0.0
    %1608 = vmatprep.subr.mxu0 0.0
    %1609 = vmatpush2.msra.mxu0 0.0
    %1610 = vmatprep.subr.mxu0 0.0
    %1611 = vmatpush2.msra.mxu0 0.0
    %1612 = vmatprep.subr.mxu0 0.0
    %1613 = vmatpush2.msra.mxu0 0.0
    %1614 = vmatprep.subr.mxu0 0.0
    %1615 = vmatpush2.msra.mxu0 0.0
    %1616 = vmatprep.subr.mxu0 0.0
    %1617 = vmatpush2.msra.mxu0 0.0
    %1618 = vmatprep.subr.mxu0 0.0
    %1619 = vmatpush2.msra.mxu0 0.0
    %1620 = vmatprep.subr.mxu0 0.0
    %1621 = vmatpush2.msra.mxu0 0.0
    %1622 = vmatprep.subr.mxu0 0.0
    %1623 = vmatpush2.msra.mxu0 0.0
    %1624 = vmatprep.subr.mxu0 0.0
    %1625 = vmatpush2.msra.mxu0 0.0
    %1626 = vmatprep.subr.mxu0 0.0
    %1627 = vmatpush2.msra.mxu0 0.0
    %1628 = vmatprep.subr.mxu0 0.0
    %1629 = vmatpush2.msra.mxu0 0.0
    %1630 = vmatprep.subr.mxu0 0.0
    %1631 = vmatpush2.msra.mxu0 0.0
    %1632 = vmatprep.mubr.f32.mxu0 0.0
    %1633 = vmatmul.mubr.f32.gmra.mxu0 %v1566
    %v1634 = vpop.f32.mrf.mxu0
    %v1635 = vadd.f32 0.0, %v1634
    %v1636 = vpop.f32.mrf.mxu0
    %1637 = vdwg.mxu0
    %1638 = vrot.lane.b32.xlu0 %v368, 104
    %v1639 = vpop.permute.xlu0 %1638
    %v1642 = vsel %vm377, %v1561, 0
    %1644 = vmatprep.subr.mxu0 0.0
    %1645 = vmatpush1.msra.mxu0 0.0
    %1646 = vmatprep.subr.mxu0 0.0
    %1647 = vmatpush1.msra.mxu0 0.0
    %1648 = vmatprep.subr.mxu0 0.0
    %1649 = vmatpush1.msra.mxu0 0.0
    %1650 = vmatprep.subr.mxu0 0.0
    %1651 = vmatpush1.msra.mxu0 0.0
    %1652 = vmatprep.subr.mxu0 0.0
    %1653 = vmatpush1.msra.mxu0 0.0
    %1654 = vmatprep.subr.mxu0 0.0
    %1655 = vmatpush1.msra.mxu0 0.0
    %1656 = vmatprep.subr.mxu0 0.0
    %1657 = vmatpush1.msra.mxu0 0.0
    %1658 = vmatprep.subr.mxu0 0.0
    %1659 = vmatpush1.msra.mxu0 0.0
    %1660 = vmatprep.subr.mxu0 0.0
    %1661 = vmatpush1.msra.mxu0 0.0
    %1662 = vmatprep.subr.mxu0 0.0
    %1663 = vmatpush1.msra.mxu0 0.0
    %1664 = vmatprep.subr.mxu0 0.0
    %1665 = vmatpush1.msra.mxu0 0.0
    %1666 = vmatprep.subr.mxu0 0.0
    %1667 = vmatpush1.msra.mxu0 0.0
    %1668 = vmatprep.subr.mxu0 0.0
    %1669 = vmatpush1.msra.mxu0 0.0
    %1670 = vmatprep.subr.mxu0 0.0
    %1671 = vmatpush1.msra.mxu0 0.0
    %1672 = vmatprep.subr.mxu0 0.0
    %1673 = vmatpush1.msra.mxu0 0.0
    %1674 = vmatprep.subr.mxu0 0.0
    %1675 = vmatpush1.msra.mxu0 %v1639
    %1676 = vmatprep.subr.mxu0 0.0
    %1677 = vmatpush2.msra.mxu0 0.0
    %1678 = vmatprep.subr.mxu0 0.0
    %1679 = vmatpush2.msra.mxu0 0.0
    %1680 = vmatprep.subr.mxu0 0.0
    %1681 = vmatpush2.msra.mxu0 0.0
    %1682 = vmatprep.subr.mxu0 0.0
    %1683 = vmatpush2.msra.mxu0 0.0
    %1684 = vmatprep.subr.mxu0 0.0
    %1685 = vmatpush2.msra.mxu0 0.0
    %1686 = vmatprep.subr.mxu0 0.0
    %1687 = vmatpush2.msra.mxu0 0.0
    %1688 = vmatprep.subr.mxu0 0.0
    %1689 = vmatpush2.msra.mxu0 0.0
    %1690 = vmatprep.subr.mxu0 0.0
    %1691 = vmatpush2.msra.mxu0 0.0
    %1692 = vmatprep.subr.mxu0 0.0
    %1693 = vmatpush2.msra.mxu0 0.0
    %1694 = vmatprep.subr.mxu0 0.0
    %1695 = vmatpush2.msra.mxu0 0.0
    %1696 = vmatprep.subr.mxu0 0.0
    %1697 = vmatpush2.msra.mxu0 0.0
    %1698 = vmatprep.subr.mxu0 0.0
    %1699 = vmatpush2.msra.mxu0 0.0
    %1700 = vmatprep.subr.mxu0 0.0
    %1701 = vmatpush2.msra.mxu0 0.0
    %1702 = vmatprep.subr.mxu0 0.0
    %1703 = vmatpush2.msra.mxu0 0.0
    %1704 = vmatprep.subr.mxu0 0.0
    %1705 = vmatpush2.msra.mxu0 0.0
    %1706 = vmatprep.subr.mxu0 0.0
    %1707 = vmatpush2.msra.mxu0 0.0
    %1708 = vmatprep.mubr.f32.mxu0 0.0
    %1709 = vmatmul.mubr.f32.gmra.mxu0 %v1642
    %v1710 = vpop.f32.mrf.mxu0
    %v1711 = vadd.f32 0.0, %v1710
    %v1712 = vpop.f32.mrf.mxu0
    %1713 = vdwg.mxu0
    %1716 = vrot.lane.b32.xlu0 %v1635, 24
    %v1717 = vpop.permute.xlu0 %1716
    %1718 = vrot.lane.b32.xlu0 %v1711, 24
    %v1719 = vpop.permute.xlu0 %1718
    %vm1722 = vcmask 261312
    %1723 = vst.msk [vmem:[#allocation2] sm:$0xff] %vm1722, %v1717
    %1724 = vst.msk [vmem:[#allocation2 + $0x8] sm:$0xff] %vm1722, %v1719
    %v1725 = vld [vmem:[#allocation2] sm:$0xff]
    %v1726 = vld [vmem:[#allocation2 + $0x8] sm:$0xff]
    %s1727 = scalar_lea.vmem [#allocation11], 96
    %v1728 = vld [vmem:[%s1727] sm:$0xff]
    %v1729 = vld [vmem:[%s1727 + $0x8] sm:$0xff]
    %v1730 = vld [vmem:[%s1727 + $0x10] sm:$0xff]
    %v1731 = vld [vmem:[%s1727 + $0x18] sm:$0xff]
    %v1732 = vlaneseq
    %v1733 = vshrl.u32 %v1732, 7
    %v1734 = vsub.s32 3, %v1733
    %v1735 = vrot.slane %v98, %v1734
    %v1737 = vsel %vm107, %v1725, 0
    %v1740 = vsel %vm107, %v1726, 0
    %1742 = vmatprep.subr.mxu0 0.0
    %1743 = vmatpush1.msra.mxu0 0.0
    %1744 = vmatprep.subr.mxu0 0.0
    %1745 = vmatpush1.msra.mxu0 0.0
    %1746 = vmatprep.subr.mxu0 0.0
    %1747 = vmatpush1.msra.mxu0 0.0
    %1748 = vmatprep.subr.mxu0 0.0
    %1749 = vmatpush1.msra.mxu0 0.0
    %1750 = vmatprep.subr.mxu0 0.0
    %1751 = vmatpush1.msra.mxu0 0.0
    %1752 = vmatprep.subr.mxu0 0.0
    %1753 = vmatpush1.msra.mxu0 0.0
    %1754 = vmatprep.subr.mxu0 0.0
    %1755 = vmatpush1.msra.mxu0 0.0
    %1756 = vmatprep.subr.mxu0 0.0
    %1757 = vmatpush1.msra.mxu0 0.0
    %1758 = vmatprep.subr.mxu0 0.0
    %1759 = vmatpush1.msra.mxu0 0.0
    %1760 = vmatprep.subr.mxu0 0.0
    %1761 = vmatpush1.msra.mxu0 0.0
    %1762 = vmatprep.subr.mxu0 0.0
    %1763 = vmatpush1.msra.mxu0 0.0
    %1764 = vmatprep.subr.mxu0 0.0
    %1765 = vmatpush1.msra.mxu0 0.0
    %1766 = vmatprep.subr.mxu0 0.0
    %1767 = vmatpush1.msra.mxu0 %v1731
    %1768 = vmatprep.subr.mxu0 0.0
    %1769 = vmatpush1.msra.mxu0 %v1730
    %1770 = vmatprep.subr.mxu0 0.0
    %1771 = vmatpush1.msra.mxu0 %v1729
    %1772 = vmatprep.subr.mxu0 0.0
    %1773 = vmatpush1.msra.mxu0 %v1728
    %1774 = vmatprep.subr.mxu0 0.0
    %1775 = vmatpush2.msra.mxu0 0.0
    %1776 = vmatprep.subr.mxu0 0.0
    %1777 = vmatpush2.msra.mxu0 0.0
    %1778 = vmatprep.subr.mxu0 0.0
    %1779 = vmatpush2.msra.mxu0 0.0
    %1780 = vmatprep.subr.mxu0 0.0
    %1781 = vmatpush2.msra.mxu0 0.0
    %1782 = vmatprep.subr.mxu0 0.0
    %1783 = vmatpush2.msra.mxu0 0.0
    %1784 = vmatprep.subr.mxu0 0.0
    %1785 = vmatpush2.msra.mxu0 0.0
    %1786 = vmatprep.subr.mxu0 0.0
    %1787 = vmatpush2.msra.mxu0 0.0
    %1788 = vmatprep.subr.mxu0 0.0
    %1789 = vmatpush2.msra.mxu0 0.0
    %1790 = vmatprep.subr.mxu0 0.0
    %1791 = vmatpush2.msra.mxu0 0.0
    %1792 = vmatprep.subr.mxu0 0.0
    %1793 = vmatpush2.msra.mxu0 0.0
    %1794 = vmatprep.subr.mxu0 0.0
    %1795 = vmatpush2.msra.mxu0 0.0
    %1796 = vmatprep.subr.mxu0 0.0
    %1797 = vmatpush2.msra.mxu0 0.0
    %1798 = vmatprep.subr.mxu0 0.0
    %1799 = vmatpush2.msra.mxu0 0.0
    %1800 = vmatprep.subr.mxu0 0.0
    %1801 = vmatpush2.msra.mxu0 0.0
    %1802 = vmatprep.subr.mxu0 0.0
    %1803 = vmatpush2.msra.mxu0 0.0
    %1804 = vmatprep.subr.mxu0 0.0
    %1805 = vmatpush2.msra.mxu0 0.0
    %1806 = vmatprep.mubr.f32.mxu0 0.0
    %1807 = vmatmul.mubr.f32.gmra.mxu0 %v1737
    %v1808 = vpop.f32.mrf.mxu0
    %v1809 = vadd.f32 %v1735, %v1808
    %v1810 = vpop.f32.mrf.mxu0
    %1811 = vmatprep.mubr.f32.mxu0 0.0
    %1812 = vmatmul.mubr.f32.gmra.mxu0 %v1740
    %v1813 = vpop.f32.mrf.mxu0
    %v1814 = vadd.f32 %v1735, %v1813
    %v1815 = vpop.f32.mrf.mxu0
    %1816 = vdwg.mxu0
    %1817 = vst.msk [vmem:[#allocation12] sm:$0xff] %vm107, %v1809
    %1818 = vst.msk [vmem:[#allocation12 + $0x8] sm:$0xff] %vm107, %v1814
    // Predicated region
    $region46: #{tpu_custom_call.1} parent=1 // pred_check
      _
    $region47: #{tpu_custom_call.1} parent=1 // pred_check_branch
      %1820 = sbr.rel (0) target = $region49
    $region48: #{tpu_custom_call.1} parent=1 // pred_region
      %s1822 = ssub.s32 256, 256
      %1823 = vsyncadd [#allocation5], %s1822
      %s1824 = sshll.u32 [#allocation12], 4
      %s1825 = int_to_ptr.vmem [resolvable:$true] %s1824
      %1830 = dma.vmem_to_hbm [thread:$0]  %s1825, 256, %s6, [#allocation5], 128, 128, 8
    $region49: #{tpu_custom_call.1} parent=1 // pred_fallthru
      _
    // Predicated region
    $region50: #{tpu_custom_call.1} parent=1 // pred_check
      _
    $region51: #{tpu_custom_call.1} parent=1 // pred_check_branch
      %1832 = sbr.rel (0) target = $region53
    $region52: #{tpu_custom_call.1} parent=1 // pred_region
      %1833 = dma.done [#allocation5], 256
    $region53: #{tpu_custom_call.1} parent=1 // pred_fallthru
      _
    %1834 = vsyncpa [#allocation4], 1
    %1835 = vsyncpa [#allocation7], 1
    %1836 = vsyncpa [#allocation10], 1
    %1837 = vsyncpa [#allocation5], 1

</llo_original>
